<compile_context>
chip_gen: v7x
topology: tpu7x:2x2x1
jax: 0.10.0
libtpu: 0.0.40
codegen_flags: <defaults>
</compile_context>

<pallas_src>
import functools

import jax
import jax.numpy as jnp
import numpy as np
from jax import lax
from jax.experimental import pallas as pl
from jax.experimental.pallas import tpu as pltpu


def _rnn_linear_kernel(x_ref, pp_ref, h0_ref, out_ref, *, T, I, H, offs):
    """x_ref: (B_pad, T*I) batch-major inputs.
    pp_ref: (rows, H) packed parameters (see prepare_params for layout).
    h0_ref: (B_pad, H) initial hidden state.
    out_ref: (B_pad, (T+1)*H): lanes [t*H,(t+1)*H) = h_t; lanes [T*H,(T+1)*H) = linear head."""
    # ---- Static, 8-row-aligned views into the packed parameter slab (loaded once).
    w_ih = pp_ref[offs["w_ih"]:offs["w_ih"] + I, :]        # (I, H)
    w_hh = pp_ref[offs["w_hh"]:offs["w_hh"] + H, :]        # (H, H)   hoisted out of the loop
    b = pp_ref[offs["b"]:offs["b"] + 1, :]                 # (1, H)   = b_ih + b_hh
    w_lin = pp_ref[offs["w_lin"]:offs["w_lin"] + H, :]     # (H, H)   W_lin^T lane-padded to H
    b_lin = pp_ref[offs["b_lin"]:offs["b_lin"] + 1, :]     # (1, H)   b_lin lane-padded to H

    x = x_ref[...]                                         # (B_pad, T*I)

    # ---- Input projection for every timestep (independent of the recurrence, so the
    #      scheduler can overlap these MXU calls with the serial h@W_hh chain below).
    xp = [
        jnp.dot(x[:, t * I:(t + 1) * I], w_ih, preferred_element_type=jnp.float32) + b
        for t in range(T)
    ]

    # ---- Serial recurrence over time, hidden state carried in vregs.
    #      T is small & static -> fully static loop (equivalent to unroll=True).
    h = h0_ref[...].astype(jnp.float32)
    for t in range(T):
        h = jnp.tanh(xp[t] + jnp.dot(h, w_hh, preferred_element_type=jnp.float32))
        out_ref[:, t * H:(t + 1) * H] = h.astype(out_ref.dtype)   # lane-dense, batch-major

    # ---- Linear head on the final hidden state, folded into the same output slab.
    #      Lanes beyond O are zero (w_lin / b_lin were zero-padded); wrapper slices them off.
    out_ref[:, T * H:(T + 1) * H] = (
        jnp.dot(h, w_lin, preferred_element_type=jnp.float32) + b_lin
    ).astype(out_ref.dtype)


def prepare_params(w_ih_t, w_hh_t, b_ih, b_hh, w_lin_t, b_lin):
    """One-time packing of all parameters into a single (rows, H) slab (one DMA in the kernel).

    Inputs are pre-transposed to right-multiply form relative to PyTorch:
      w_ih_t (I, H), w_hh_t (H, H), w_lin_t (H, O); biases (1, H) / (1, O).
    Each section starts on an 8-row (sublane) boundary; W_lin / b_lin are lane-padded to H.
    """
    I, H = w_ih_t.shape
    O = w_lin_t.shape[1]
    assert O <= H, "output_size must be <= hidden_size for lane-padding the linear head"
    pad8 = lambda r: ((r + 7) // 8) * 8

    sections = [
        ("w_ih", w_ih_t),
        ("w_hh", w_hh_t),
        ("b", (b_ih + b_hh).reshape(1, H)),
        ("w_lin", jnp.pad(w_lin_t, ((0, 0), (0, H - O)))),
        ("b_lin", jnp.pad(b_lin.reshape(1, O), ((0, 0), (0, H - O)))),
    ]
    offsets, chunks, row = {}, [], 0
    for name, arr in sections:
        offsets[name] = row
        r = arr.shape[0]
        chunks.append(jnp.pad(arr, ((0, pad8(r) - r), (0, 0))))
        row += pad8(r)
    packed = jnp.concatenate(chunks, axis=0)               # (rows, H)
    return {"packed": packed, "offsets": offsets, "I": I, "H": H, "O": O}


def rnn_net_forward(X, hidden_prev, prepared):
    """X: (B, T, I) batch_first; hidden_prev: (1, B, H). Returns (out (B,T,H), ht (B,O))."""
    B, T, I = X.shape
    H, O = prepared["H"], prepared["O"]
    assert I == prepared["I"]
    B_pad = ((B + 7) // 8) * 8   # pad batch to a sublane multiple

    # Batch-major packing: one reshape (free) + one pad. No transpose anywhere in the wrapper.
    x_packed = jnp.pad(X.reshape(B, T * I), ((0, B_pad - B), (0, 0)))      # (B_pad, T*I)
    h0 = jnp.pad(hidden_prev[0], ((0, B_pad - B), (0, 0)))                 # (B_pad, H)

    kernel = functools.partial(
        _rnn_linear_kernel, T=T, I=I, H=H, offs=prepared["offsets"])

    grid_spec = pltpu.PrefetchScalarGridSpec(
        num_scalar_prefetch=0,
        grid=(1,),   # single invocation; whole problem (few KB) is VMEM-resident
        in_specs=[
            pl.BlockSpec((B_pad, T * I), lambda i: (0, 0)),           # X (batch-major)
            pl.BlockSpec(prepared["packed"].shape, lambda i: (0, 0)),  # packed parameters
            pl.BlockSpec((B_pad, H), lambda i: (0, 0)),               # h0
        ],
        out_specs=pl.BlockSpec((B_pad, (T + 1) * H), lambda i: (0, 0)),
    )

    out_full = pl.pallas_call(
        kernel,
        out_shape=jax.ShapeDtypeStruct((B_pad, (T + 1) * H), X.dtype),
        grid_spec=grid_spec,
        compiler_params=pltpu.CompilerParams(
            dimension_semantics=("arbitrary",),   # recurrence is inside the body
        ),
    )(x_packed, prepared["packed"], h0)

    # Cheap layout ops (fused under jit): drop batch padding, split the slab.
    out = out_full[:B, :T * H].reshape(B, T, H)          # (B, T, H)  batch_first
    ht = out_full[:B, T * H:T * H + O]                   # (B, O)
    return out, ht


def reference_forward(X, hidden_prev, params):
    """Pure-JAX reference (mirrors PyTorch nn.RNN(tanh, batch_first) + nn.Linear)."""
    h0 = hidden_prev[0].astype(jnp.float32)

    def step(h, x_t):
        h_new = jnp.tanh(x_t @ params["w_ih"] + h @ params["w_hh"] + params["b"])
        return h_new, h_new

    x_tm = jnp.transpose(X, (1, 0, 2)).astype(jnp.float32)
    h_T, outs = lax.scan(step, h0, x_tm)
    out = jnp.transpose(outs, (1, 0, 2))
    ht = h_T @ params["w_lin"] + params["b_lin"]
    return out, ht


if __name__ == "__main__":
    # Small shapes consistent with the module.
    batch, seq = 2, 8
    input_size, hidden_size, output_size = 8, 32, 4

    key = jax.random.PRNGKey(0)
    kx, k1, k2, k3, k4, k5, k6 = jax.random.split(key, 7)
    bound = 1.0 / np.sqrt(hidden_size)

    # Stored pre-transposed relative to PyTorch (which stores W_ih as (H,I), W_lin as (O,H)).
    w_ih = jax.random.uniform(k1, (input_size, hidden_size), jnp.float32, -bound, bound)
    w_hh = jax.random.uniform(k2, (hidden_size, hidden_size), jnp.float32, -bound, bound)
    b_ih = jax.random.uniform(k3, (1, hidden_size), jnp.float32, -bound, bound)
    b_hh = jax.random.uniform(k4, (1, hidden_size), jnp.float32, -bound, bound)
    w_lin = jax.random.uniform(k5, (hidden_size, output_size), jnp.float32, -bound, bound)
    b_lin = jax.random.uniform(k6, (1, output_size), jnp.float32, -bound, bound)

    # One-time parameter packing (init-time cost, not per-call).
    prepared = prepare_params(w_ih, w_hh, b_ih, b_hh, w_lin, b_lin)

    X = jax.random.normal(kx, (batch, seq, input_size), jnp.float32)
    hidden_prev = jnp.zeros((1, batch, hidden_size), jnp.float32)   # like torch.zeros(1, B, H)

    fwd = jax.jit(functools.partial(rnn_net_forward, prepared=prepared))
    out, ht = fwd(X, hidden_prev)
    jax.block_until_ready((out, ht))

    params_ref = {"w_ih": w_ih, "w_hh": w_hh, "b": b_ih + b_hh,
                  "w_lin": w_lin, "b_lin": b_lin}
    out_ref, ht_ref = reference_forward(X, hidden_prev, params_ref)
    np.testing.assert_allclose(np.asarray(out), np.asarray(out_ref), rtol=1e-4, atol=1e-4)
    np.testing.assert_allclose(np.asarray(ht), np.asarray(ht_ref), rtol=1e-4, atol=1e-4)

    assert out.shape == (batch, seq, hidden_size)
    assert ht.shape == (batch, output_size)
    print("KERNEL_OK")
</pallas_src>

<mosaic_0001>
module attributes {stable_mosaic.version = 11 : i64} {
  func.func @_rnn_linear_kernel(%arg0: i32, %arg1: memref<8x64xf32, #tpu.memory_space<vmem>>, %arg2: memref<88x32xf32, #tpu.memory_space<vmem>>, %arg3: memref<8x32xf32, #tpu.memory_space<vmem>>, %arg4: memref<8x288xf32, #tpu.memory_space<vmem>>) attributes {dimension_semantics = [#tpu.dimension_semantics<arbitrary>], iteration_bounds = array<i64: 1>, scalar_prefetch = 0 : i64, scratch_operands = 0 : i64, tpu.core_type = #tpu.core_type<tc>, window_params = [{pipeline_mode = #tpu.pipeline_mode<synchronous>, transform_indices = @transform_0, window_bounds = array<i64: 8, 64>}, {pipeline_mode = #tpu.pipeline_mode<synchronous>, transform_indices = @transform_1, window_bounds = array<i64: 88, 32>}, {pipeline_mode = #tpu.pipeline_mode<synchronous>, transform_indices = @transform_2, window_bounds = array<i64: 8, 32>}, {pipeline_mode = #tpu.pipeline_mode<synchronous>, transform_indices = @transform_3, window_bounds = array<i64: 8, 288>}]} {
    %c0 = arith.constant 0 : index
    %c0_0 = arith.constant 0 : index
    %0 = vector.load %arg2[%c0, %c0_0] : memref<88x32xf32, #tpu.memory_space<vmem>>, vector<8x32xf32>
    %c8 = arith.constant 8 : index
    %c0_1 = arith.constant 0 : index
    %1 = vector.load %arg2[%c8, %c0_1] : memref<88x32xf32, #tpu.memory_space<vmem>>, vector<32x32xf32>
    %c40 = arith.constant 40 : index
    %c0_2 = arith.constant 0 : index
    %2 = vector.load %arg2[%c40, %c0_2] : memref<88x32xf32, #tpu.memory_space<vmem>>, vector<1x32xf32>
    %c48 = arith.constant 48 : index
    %c0_3 = arith.constant 0 : index
    %3 = vector.load %arg2[%c48, %c0_3] : memref<88x32xf32, #tpu.memory_space<vmem>>, vector<32x32xf32>
    %c80 = arith.constant 80 : index
    %c0_4 = arith.constant 0 : index
    %4 = vector.load %arg2[%c80, %c0_4] : memref<88x32xf32, #tpu.memory_space<vmem>>, vector<1x32xf32>
    %c0_5 = arith.constant 0 : index
    %c0_6 = arith.constant 0 : index
    %5 = vector.load %arg1[%c0_5, %c0_6] : memref<8x64xf32, #tpu.memory_space<vmem>>, vector<8x64xf32>
    %6 = vector.extract_strided_slice %5 {offsets = [0, 0], sizes = [8, 8], strides = [1, 1]} : vector<8x64xf32> to vector<8x8xf32>
    %cst = arith.constant dense<0.000000e+00> : vector<8x32xf32>
    %7 = tpu.matmul %6, %0, %cst {dimension_numbers = #tpu.dot_dimension_numbers<[1], [0], [0], [1], [0, 0, 1, 1], [], []>} : vector<8x8xf32>, vector<8x32xf32>, vector<8x32xf32> -> vector<8x32xf32>
    %8 = vector.broadcast %2 : vector<1x32xf32> to vector<8x32xf32>
    %9 = arith.addf %7, %8 : vector<8x32xf32>
    %10 = vector.extract_strided_slice %5 {offsets = [0, 8], sizes = [8, 8], strides = [1, 1]} : vector<8x64xf32> to vector<8x8xf32>
    %cst_7 = arith.constant dense<0.000000e+00> : vector<8x32xf32>
    %11 = tpu.matmul %10, %0, %cst_7 {dimension_numbers = #tpu.dot_dimension_numbers<[1], [0], [0], [1], [0, 0, 1, 1], [], []>} : vector<8x8xf32>, vector<8x32xf32>, vector<8x32xf32> -> vector<8x32xf32>
    %12 = vector.broadcast %2 : vector<1x32xf32> to vector<8x32xf32>
    %13 = arith.addf %11, %12 : vector<8x32xf32>
    %14 = vector.extract_strided_slice %5 {offsets = [0, 16], sizes = [8, 8], strides = [1, 1]} : vector<8x64xf32> to vector<8x8xf32>
    %cst_8 = arith.constant dense<0.000000e+00> : vector<8x32xf32>
    %15 = tpu.matmul %14, %0, %cst_8 {dimension_numbers = #tpu.dot_dimension_numbers<[1], [0], [0], [1], [0, 0, 1, 1], [], []>} : vector<8x8xf32>, vector<8x32xf32>, vector<8x32xf32> -> vector<8x32xf32>
    %16 = vector.broadcast %2 : vector<1x32xf32> to vector<8x32xf32>
    %17 = arith.addf %15, %16 : vector<8x32xf32>
    %18 = vector.extract_strided_slice %5 {offsets = [0, 24], sizes = [8, 8], strides = [1, 1]} : vector<8x64xf32> to vector<8x8xf32>
    %cst_9 = arith.constant dense<0.000000e+00> : vector<8x32xf32>
    %19 = tpu.matmul %18, %0, %cst_9 {dimension_numbers = #tpu.dot_dimension_numbers<[1], [0], [0], [1], [0, 0, 1, 1], [], []>} : vector<8x8xf32>, vector<8x32xf32>, vector<8x32xf32> -> vector<8x32xf32>
    %20 = vector.broadcast %2 : vector<1x32xf32> to vector<8x32xf32>
    %21 = arith.addf %19, %20 : vector<8x32xf32>
    %22 = vector.extract_strided_slice %5 {offsets = [0, 32], sizes = [8, 8], strides = [1, 1]} : vector<8x64xf32> to vector<8x8xf32>
    %cst_10 = arith.constant dense<0.000000e+00> : vector<8x32xf32>
    %23 = tpu.matmul %22, %0, %cst_10 {dimension_numbers = #tpu.dot_dimension_numbers<[1], [0], [0], [1], [0, 0, 1, 1], [], []>} : vector<8x8xf32>, vector<8x32xf32>, vector<8x32xf32> -> vector<8x32xf32>
    %24 = vector.broadcast %2 : vector<1x32xf32> to vector<8x32xf32>
    %25 = arith.addf %23, %24 : vector<8x32xf32>
    %26 = vector.extract_strided_slice %5 {offsets = [0, 40], sizes = [8, 8], strides = [1, 1]} : vector<8x64xf32> to vector<8x8xf32>
    %cst_11 = arith.constant dense<0.000000e+00> : vector<8x32xf32>
    %27 = tpu.matmul %26, %0, %cst_11 {dimension_numbers = #tpu.dot_dimension_numbers<[1], [0], [0], [1], [0, 0, 1, 1], [], []>} : vector<8x8xf32>, vector<8x32xf32>, vector<8x32xf32> -> vector<8x32xf32>
    %28 = vector.broadcast %2 : vector<1x32xf32> to vector<8x32xf32>
    %29 = arith.addf %27, %28 : vector<8x32xf32>
    %30 = vector.extract_strided_slice %5 {offsets = [0, 48], sizes = [8, 8], strides = [1, 1]} : vector<8x64xf32> to vector<8x8xf32>
    %cst_12 = arith.constant dense<0.000000e+00> : vector<8x32xf32>
    %31 = tpu.matmul %30, %0, %cst_12 {dimension_numbers = #tpu.dot_dimension_numbers<[1], [0], [0], [1], [0, 0, 1, 1], [], []>} : vector<8x8xf32>, vector<8x32xf32>, vector<8x32xf32> -> vector<8x32xf32>
    %32 = vector.broadcast %2 : vector<1x32xf32> to vector<8x32xf32>
    %33 = arith.addf %31, %32 : vector<8x32xf32>
    %34 = vector.extract_strided_slice %5 {offsets = [0, 56], sizes = [8, 8], strides = [1, 1]} : vector<8x64xf32> to vector<8x8xf32>
    %cst_13 = arith.constant dense<0.000000e+00> : vector<8x32xf32>
    %35 = tpu.matmul %34, %0, %cst_13 {dimension_numbers = #tpu.dot_dimension_numbers<[1], [0], [0], [1], [0, 0, 1, 1], [], []>} : vector<8x8xf32>, vector<8x32xf32>, vector<8x32xf32> -> vector<8x32xf32>
    %36 = vector.broadcast %2 : vector<1x32xf32> to vector<8x32xf32>
    %37 = arith.addf %35, %36 : vector<8x32xf32>
    %c0_14 = arith.constant 0 : index
    %c0_15 = arith.constant 0 : index
    %38 = vector.load %arg3[%c0_14, %c0_15] : memref<8x32xf32, #tpu.memory_space<vmem>>, vector<8x32xf32>
    %cst_16 = arith.constant dense<0.000000e+00> : vector<8x32xf32>
    %39 = tpu.matmul %38, %1, %cst_16 {dimension_numbers = #tpu.dot_dimension_numbers<[1], [0], [0], [1], [0, 0, 1, 1], [], []>} : vector<8x32xf32>, vector<32x32xf32>, vector<8x32xf32> -> vector<8x32xf32>
    %40 = arith.addf %9, %39 : vector<8x32xf32>
    %41 = math.tanh %40 : vector<8x32xf32>
    %c0_17 = arith.constant 0 : index
    %c0_18 = arith.constant 0 : index
    %42 = vector.load %arg4[%c0_17, %c0_18] : memref<8x288xf32, #tpu.memory_space<vmem>>, vector<8x32xf32>
    tpu.vector_store %arg4[%c0_17, %c0_18], %41 {strides = array<i32>} : memref<8x288xf32, #tpu.memory_space<vmem>>, vector<8x32xf32>,
    %cst_19 = arith.constant dense<0.000000e+00> : vector<8x32xf32>
    %43 = tpu.matmul %41, %1, %cst_19 {dimension_numbers = #tpu.dot_dimension_numbers<[1], [0], [0], [1], [0, 0, 1, 1], [], []>} : vector<8x32xf32>, vector<32x32xf32>, vector<8x32xf32> -> vector<8x32xf32>
    %44 = arith.addf %13, %43 : vector<8x32xf32>
    %45 = math.tanh %44 : vector<8x32xf32>
    %c0_20 = arith.constant 0 : index
    %c32 = arith.constant 32 : index
    %46 = vector.load %arg4[%c0_20, %c32] : memref<8x288xf32, #tpu.memory_space<vmem>>, vector<8x32xf32>
    tpu.vector_store %arg4[%c0_20, %c32], %45 {strides = array<i32>} : memref<8x288xf32, #tpu.memory_space<vmem>>, vector<8x32xf32>,
    %cst_21 = arith.constant dense<0.000000e+00> : vector<8x32xf32>
    %47 = tpu.matmul %45, %1, %cst_21 {dimension_numbers = #tpu.dot_dimension_numbers<[1], [0], [0], [1], [0, 0, 1, 1], [], []>} : vector<8x32xf32>, vector<32x32xf32>, vector<8x32xf32> -> vector<8x32xf32>
    %48 = arith.addf %17, %47 : vector<8x32xf32>
    %49 = math.tanh %48 : vector<8x32xf32>
    %c0_22 = arith.constant 0 : index
    %c64 = arith.constant 64 : index
    %50 = vector.load %arg4[%c0_22, %c64] : memref<8x288xf32, #tpu.memory_space<vmem>>, vector<8x32xf32>
    tpu.vector_store %arg4[%c0_22, %c64], %49 {strides = array<i32>} : memref<8x288xf32, #tpu.memory_space<vmem>>, vector<8x32xf32>,
    %cst_23 = arith.constant dense<0.000000e+00> : vector<8x32xf32>
    %51 = tpu.matmul %49, %1, %cst_23 {dimension_numbers = #tpu.dot_dimension_numbers<[1], [0], [0], [1], [0, 0, 1, 1], [], []>} : vector<8x32xf32>, vector<32x32xf32>, vector<8x32xf32> -> vector<8x32xf32>
    %52 = arith.addf %21, %51 : vector<8x32xf32>
    %53 = math.tanh %52 : vector<8x32xf32>
    %c0_24 = arith.constant 0 : index
    %c96 = arith.constant 96 : index
    %54 = vector.load %arg4[%c0_24, %c96] : memref<8x288xf32, #tpu.memory_space<vmem>>, vector<8x32xf32>
    tpu.vector_store %arg4[%c0_24, %c96], %53 {strides = array<i32>} : memref<8x288xf32, #tpu.memory_space<vmem>>, vector<8x32xf32>,
    %cst_25 = arith.constant dense<0.000000e+00> : vector<8x32xf32>
    %55 = tpu.matmul %53, %1, %cst_25 {dimension_numbers = #tpu.dot_dimension_numbers<[1], [0], [0], [1], [0, 0, 1, 1], [], []>} : vector<8x32xf32>, vector<32x32xf32>, vector<8x32xf32> -> vector<8x32xf32>
    %56 = arith.addf %25, %55 : vector<8x32xf32>
    %57 = math.tanh %56 : vector<8x32xf32>
    %c0_26 = arith.constant 0 : index
    %c128 = arith.constant 128 : index
    %58 = vector.load %arg4[%c0_26, %c128] : memref<8x288xf32, #tpu.memory_space<vmem>>, vector<8x32xf32>
    tpu.vector_store %arg4[%c0_26, %c128], %57 {strides = array<i32>} : memref<8x288xf32, #tpu.memory_space<vmem>>, vector<8x32xf32>,
    %cst_27 = arith.constant dense<0.000000e+00> : vector<8x32xf32>
    %59 = tpu.matmul %57, %1, %cst_27 {dimension_numbers = #tpu.dot_dimension_numbers<[1], [0], [0], [1], [0, 0, 1, 1], [], []>} : vector<8x32xf32>, vector<32x32xf32>, vector<8x32xf32> -> vector<8x32xf32>
    %60 = arith.addf %29, %59 : vector<8x32xf32>
    %61 = math.tanh %60 : vector<8x32xf32>
    %c0_28 = arith.constant 0 : index
    %c160 = arith.constant 160 : index
    %62 = vector.load %arg4[%c0_28, %c160] : memref<8x288xf32, #tpu.memory_space<vmem>>, vector<8x32xf32>
    tpu.vector_store %arg4[%c0_28, %c160], %61 {strides = array<i32>} : memref<8x288xf32, #tpu.memory_space<vmem>>, vector<8x32xf32>,
    %cst_29 = arith.constant dense<0.000000e+00> : vector<8x32xf32>
    %63 = tpu.matmul %61, %1, %cst_29 {dimension_numbers = #tpu.dot_dimension_numbers<[1], [0], [0], [1], [0, 0, 1, 1], [], []>} : vector<8x32xf32>, vector<32x32xf32>, vector<8x32xf32> -> vector<8x32xf32>
    %64 = arith.addf %33, %63 : vector<8x32xf32>
    %65 = math.tanh %64 : vector<8x32xf32>
    %c0_30 = arith.constant 0 : index
    %c192 = arith.constant 192 : index
    %66 = vector.load %arg4[%c0_30, %c192] : memref<8x288xf32, #tpu.memory_space<vmem>>, vector<8x32xf32>
    tpu.vector_store %arg4[%c0_30, %c192], %65 {strides = array<i32>} : memref<8x288xf32, #tpu.memory_space<vmem>>, vector<8x32xf32>,
    %cst_31 = arith.constant dense<0.000000e+00> : vector<8x32xf32>
    %67 = tpu.matmul %65, %1, %cst_31 {dimension_numbers = #tpu.dot_dimension_numbers<[1], [0], [0], [1], [0, 0, 1, 1], [], []>} : vector<8x32xf32>, vector<32x32xf32>, vector<8x32xf32> -> vector<8x32xf32>
    %68 = arith.addf %37, %67 : vector<8x32xf32>
    %69 = math.tanh %68 : vector<8x32xf32>
    %c0_32 = arith.constant 0 : index
    %c224 = arith.constant 224 : index
    %70 = vector.load %arg4[%c0_32, %c224] : memref<8x288xf32, #tpu.memory_space<vmem>>, vector<8x32xf32>
    tpu.vector_store %arg4[%c0_32, %c224], %69 {strides = array<i32>} : memref<8x288xf32, #tpu.memory_space<vmem>>, vector<8x32xf32>,
    %cst_33 = arith.constant dense<0.000000e+00> : vector<8x32xf32>
    %71 = tpu.matmul %69, %3, %cst_33 {dimension_numbers = #tpu.dot_dimension_numbers<[1], [0], [0], [1], [0, 0, 1, 1], [], []>} : vector<8x32xf32>, vector<32x32xf32>, vector<8x32xf32> -> vector<8x32xf32>
    %72 = vector.broadcast %4 : vector<1x32xf32> to vector<8x32xf32>
    %73 = arith.addf %71, %72 : vector<8x32xf32>
    %c0_34 = arith.constant 0 : index
    %c256 = arith.constant 256 : index
    %74 = vector.load %arg4[%c0_34, %c256] : memref<8x288xf32, #tpu.memory_space<vmem>>, vector<8x32xf32>
    tpu.vector_store %arg4[%c0_34, %c256], %73 {strides = array<i32>} : memref<8x288xf32, #tpu.memory_space<vmem>>, vector<8x32xf32>,
    return
  }
  func.func @transform_0(%arg0: i32) -> (i32, i32) {
    %c0_i32 = arith.constant 0 : i32
    %c0_i32_0 = arith.constant 0 : i32
    %c0_i32_1 = arith.constant 0 : i32
    return %c0_i32, %c0_i32_0 : i32, i32
  }
  func.func @transform_1(%arg0: i32) -> (i32, i32) {
    %c0_i32 = arith.constant 0 : i32
    %c0_i32_0 = arith.constant 0 : i32
    %c0_i32_1 = arith.constant 0 : i32
    return %c0_i32, %c0_i32_0 : i32, i32
  }
  func.func @transform_2(%arg0: i32) -> (i32, i32) {
    %c0_i32 = arith.constant 0 : i32
    %c0_i32_0 = arith.constant 0 : i32
    %c0_i32_1 = arith.constant 0 : i32
    return %c0_i32, %c0_i32_0 : i32, i32
  }
  func.func @transform_3(%arg0: i32) -> (i32, i32) {
    %c0_i32 = arith.constant 0 : i32
    %c0_i32_0 = arith.constant 0 : i32
    %c0_i32_1 = arith.constant 0 : i32
    return %c0_i32, %c0_i32_0 : i32, i32
  }
}

</mosaic_0001>

<llo_original>
// kernel: rnn_net_forward.1
$region0: #{rnn_net_forward.1}
  #allocation0 [shape = 'u32[]', space=smem, size = 0x4, offset = 0x4, fixed_abs, tag = 'smem constant byte address 0x4 - core index']
  #allocation1 [shape = 'u32[144,128]{1,0:T(1,128)}', space=vmem, size = 0x12000, scoped, tag = 'internal scratch']
  %s0 = inlined_call_operand.vmem [shape: f32[8,64], index: 0, kind: input, shape index: {}]
  %s1 = inlined_call_operand.hbm [shape: f32[88,32], index: 1, kind: input, shape index: {}]
  %s2 = inlined_call_operand.vmem [shape: f32[8,32], index: 2, kind: input, shape index: {}]
  %s3 = inlined_call_operand.vmem [shape: f32[8,288], index: 3, kind: output, shape index: {}]
  %s4 = sld [smem:[#allocation0]]
  $region26: #{rnn_net_forward.1} parent=0
    _
  %s6 = ssub.s32 1, %s4
  %s7 = scalar_select 0, %s6, %s4
  $region1: #{rnn_net_forward.1} parent=0
    #allocation2 [shape = 'u8[45056]{0}', space=vmem, size = 0xb000, scoped, tag = 'input window, operand 1, single buffered']
    #allocation3 [shape = 's32[1]{0}', space=sflag, size = 0x4, scoped, tag = 'scoped memory for rnn_net_forward.1']
    %8 = vsyncpa [#allocation3], 0
    // Predicated region
    $region2: #{rnn_net_forward.1} parent=1 // pred_check
      _
    $region3: #{rnn_net_forward.1} parent=1 // pred_check_branch
      %10 = sbr.rel (0) target = $region5
    $region4: #{rnn_net_forward.1} parent=1 // pred_region
      _
    $region5: #{rnn_net_forward.1} parent=1 // pred_fallthru
      _
    // Predicated region
    $region6: #{rnn_net_forward.1} parent=1 // pred_check
      _
    $region7: #{rnn_net_forward.1} parent=1 // pred_check_branch
      %12 = sbr.rel (0) target = $region9
    $region8: #{rnn_net_forward.1} parent=1 // pred_region
      %s14 = ssub.s32 1408, 1408
      %15 = vsyncadd [#allocation3], %s14
      %s16 = sshll.u32 [#allocation2], 4
      %s17 = int_to_ptr.vmem [resolvable:$true] %s16
      %22 = dma.hbm_to_vmem [thread:$0]  %s1, 1408, %s17, [#allocation3], 128, 128, 8
    $region9: #{rnn_net_forward.1} parent=1 // pred_fallthru
      _
    // Predicated region
    $region10: #{rnn_net_forward.1} parent=1 // pred_check
      _
    $region11: #{rnn_net_forward.1} parent=1 // pred_check_branch
      %24 = sbr.rel (0) target = $region13
    $region12: #{rnn_net_forward.1} parent=1 // pred_region
      _
    $region13: #{rnn_net_forward.1} parent=1 // pred_fallthru
      _
    // Predicated region
    $region14: #{rnn_net_forward.1} parent=1 // pred_check
      _
    $region15: #{rnn_net_forward.1} parent=1 // pred_check_branch
      %26 = sbr.rel (0) target = $region17
    $region16: #{rnn_net_forward.1} parent=1 // pred_region
      %27 = dma.done [#allocation3], 1408
    $region17: #{rnn_net_forward.1} parent=1 // pred_fallthru
      _
    %v28 = vld [vmem:[#allocation2] sm:$0xff]
    %v29 = vld [vmem:[#allocation2 + $0x8] sm:$0xff]
    %v30 = vld [vmem:[#allocation2 + $0x10] sm:$0xff]
    %v31 = vld [vmem:[#allocation2 + $0x18] sm:$0xff]
    %v32 = vld [vmem:[#allocation2 + $0x20] sm:$0xff]
    %v33 = vld [vmem:[#allocation2 + $0x28] sm:$0x1]
    %v34 = vld [vmem:[#allocation2 + $0x30] sm:$0xff]
    %v35 = vld [vmem:[#allocation2 + $0x38] sm:$0xff]
    %v36 = vld [vmem:[#allocation2 + $0x40] sm:$0xff]
    %v37 = vld [vmem:[#allocation2 + $0x48] sm:$0xff]
    %v38 = vld [vmem:[#allocation2 + $0x50] sm:$0x1]
    %v39 = vld [vmem:[%s0] sm:$0xff]
    %v40 = vlaneseq
    %v41 = vshrl.u32 %v40, 7
    %v42 = vsub.s32 0, %v41
    %v43 = vrot.slane %v33, %v42
    %vm44 = vcmask 64512
    %v46 = vsel %vm44, %v39, 0
    %48 = vmatprep.subr.mxu0 0.0
    %49 = vmatpush1.msra.mxu0 %v28
    %50 = vmatprep.subr.mxu0 0.0
    %51 = vmatpush1.msra.mxu0 0.0
    %52 = vmatprep.subr.mxu0 0.0
    %53 = vmatpush1.msra.mxu0 0.0
    %54 = vmatprep.subr.mxu0 0.0
    %55 = vmatpush1.msra.mxu0 0.0
    %56 = vmatprep.subr.mxu0 0.0
    %57 = vmatpush1.msra.mxu0 0.0
    %58 = vmatprep.subr.mxu0 0.0
    %59 = vmatpush1.msra.mxu0 0.0
    %60 = vmatprep.subr.mxu0 0.0
    %61 = vmatpush1.msra.mxu0 0.0
    %62 = vmatprep.subr.mxu0 0.0
    %63 = vmatpush1.msra.mxu0 0.0
    %64 = vmatprep.subr.mxu0 0.0
    %65 = vmatpush1.msra.mxu0 0.0
    %66 = vmatprep.subr.mxu0 0.0
    %67 = vmatpush1.msra.mxu0 0.0
    %68 = vmatprep.subr.mxu0 0.0
    %69 = vmatpush1.msra.mxu0 0.0
    %70 = vmatprep.subr.mxu0 0.0
    %71 = vmatpush1.msra.mxu0 0.0
    %72 = vmatprep.subr.mxu0 0.0
    %73 = vmatpush1.msra.mxu0 0.0
    %74 = vmatprep.subr.mxu0 0.0
    %75 = vmatpush1.msra.mxu0 0.0
    %76 = vmatprep.subr.mxu0 0.0
    %77 = vmatpush1.msra.mxu0 0.0
    %78 = vmatprep.subr.mxu0 0.0
    %79 = vmatpush1.msra.mxu0 0.0
    %80 = vmatprep.subr.mxu0 0.0
    %81 = vmatpush1.msra.mxu0 0.0
    %82 = vmatprep.subr.mxu0 0.0
    %83 = vmatpush1.msra.mxu0 0.0
    %84 = vmatprep.subr.mxu0 0.0
    %85 = vmatpush1.msra.mxu0 0.0
    %86 = vmatprep.subr.mxu0 0.0
    %87 = vmatpush1.msra.mxu0 0.0
    %88 = vmatprep.subr.mxu0 0.0
    %89 = vmatpush1.msra.mxu0 0.0
    %90 = vmatprep.subr.mxu0 0.0
    %91 = vmatpush1.msra.mxu0 0.0
    %92 = vmatprep.subr.mxu0 0.0
    %93 = vmatpush1.msra.mxu0 0.0
    %94 = vmatprep.subr.mxu0 0.0
    %95 = vmatpush1.msra.mxu0 0.0
    %96 = vmatprep.subr.mxu0 0.0
    %97 = vmatpush1.msra.mxu0 0.0
    %98 = vmatprep.subr.mxu0 0.0
    %99 = vmatpush1.msra.mxu0 0.0
    %100 = vmatprep.subr.mxu0 0.0
    %101 = vmatpush1.msra.mxu0 0.0
    %102 = vmatprep.subr.mxu0 0.0
    %103 = vmatpush1.msra.mxu0 0.0
    %104 = vmatprep.subr.mxu0 0.0
    %105 = vmatpush1.msra.mxu0 0.0
    %106 = vmatprep.subr.mxu0 0.0
    %107 = vmatpush1.msra.mxu0 0.0
    %108 = vmatprep.subr.mxu0 0.0
    %109 = vmatpush1.msra.mxu0 0.0
    %110 = vmatprep.subr.mxu0 0.0
    %111 = vmatpush1.msra.mxu0 0.0
    %112 = vmatprep.mubr.f32.mxu0 0.0
    %113 = vmatmul.mubr.f32.gmra.mrb[0].mxu0 %v46
    %v114 = vpop.f32.mrb[0].mxu0
    %v115 = vadd.f32 %v43, %v114
    %v116 = vpop.f32.mrb[0].mxu0
    %117 = vdwg.mxu0
    %118 = vrot.lane.b32.xlu0 %v39, 120
    %v119 = vpop.permute.xlu0 %118
    %v120 = vsel %vm44, %v119, 0
    %122 = vmatprep.subr.mxu0 0.0
    %123 = vmatpush1.msra.mxu0 %v28
    %124 = vmatprep.subr.mxu0 0.0
    %125 = vmatpush1.msra.mxu0 0.0
    %126 = vmatprep.subr.mxu0 0.0
    %127 = vmatpush1.msra.mxu0 0.0
    %128 = vmatprep.subr.mxu0 0.0
    %129 = vmatpush1.msra.mxu0 0.0
    %130 = vmatprep.subr.mxu0 0.0
    %131 = vmatpush1.msra.mxu0 0.0
    %132 = vmatprep.subr.mxu0 0.0
    %133 = vmatpush1.msra.mxu0 0.0
    %134 = vmatprep.subr.mxu0 0.0
    %135 = vmatpush1.msra.mxu0 0.0
    %136 = vmatprep.subr.mxu0 0.0
    %137 = vmatpush1.msra.mxu0 0.0
    %138 = vmatprep.subr.mxu0 0.0
    %139 = vmatpush1.msra.mxu0 0.0
    %140 = vmatprep.subr.mxu0 0.0
    %141 = vmatpush1.msra.mxu0 0.0
    %142 = vmatprep.subr.mxu0 0.0
    %143 = vmatpush1.msra.mxu0 0.0
    %144 = vmatprep.subr.mxu0 0.0
    %145 = vmatpush1.msra.mxu0 0.0
    %146 = vmatprep.subr.mxu0 0.0
    %147 = vmatpush1.msra.mxu0 0.0
    %148 = vmatprep.subr.mxu0 0.0
    %149 = vmatpush1.msra.mxu0 0.0
    %150 = vmatprep.subr.mxu0 0.0
    %151 = vmatpush1.msra.mxu0 0.0
    %152 = vmatprep.subr.mxu0 0.0
    %153 = vmatpush1.msra.mxu0 0.0
    %154 = vmatprep.subr.mxu0 0.0
    %155 = vmatpush1.msra.mxu0 0.0
    %156 = vmatprep.subr.mxu0 0.0
    %157 = vmatpush1.msra.mxu0 0.0
    %158 = vmatprep.subr.mxu0 0.0
    %159 = vmatpush1.msra.mxu0 0.0
    %160 = vmatprep.subr.mxu0 0.0
    %161 = vmatpush1.msra.mxu0 0.0
    %162 = vmatprep.subr.mxu0 0.0
    %163 = vmatpush1.msra.mxu0 0.0
    %164 = vmatprep.subr.mxu0 0.0
    %165 = vmatpush1.msra.mxu0 0.0
    %166 = vmatprep.subr.mxu0 0.0
    %167 = vmatpush1.msra.mxu0 0.0
    %168 = vmatprep.subr.mxu0 0.0
    %169 = vmatpush1.msra.mxu0 0.0
    %170 = vmatprep.subr.mxu0 0.0
    %171 = vmatpush1.msra.mxu0 0.0
    %172 = vmatprep.subr.mxu0 0.0
    %173 = vmatpush1.msra.mxu0 0.0
    %174 = vmatprep.subr.mxu0 0.0
    %175 = vmatpush1.msra.mxu0 0.0
    %176 = vmatprep.subr.mxu0 0.0
    %177 = vmatpush1.msra.mxu0 0.0
    %178 = vmatprep.subr.mxu0 0.0
    %179 = vmatpush1.msra.mxu0 0.0
    %180 = vmatprep.subr.mxu0 0.0
    %181 = vmatpush1.msra.mxu0 0.0
    %182 = vmatprep.subr.mxu0 0.0
    %183 = vmatpush1.msra.mxu0 0.0
    %184 = vmatprep.subr.mxu0 0.0
    %185 = vmatpush1.msra.mxu0 0.0
    %186 = vmatprep.mubr.f32.mxu0 0.0
    %187 = vmatmul.mubr.f32.gmra.mrb[0].mxu0 %v120
    %v188 = vpop.f32.mrb[0].mxu0
    %v189 = vadd.f32 %v43, %v188
    %v190 = vpop.f32.mrb[0].mxu0
    %191 = vdwg.mxu0
    %192 = vrot.lane.b32.xlu0 %v39, 112
    %v193 = vpop.permute.xlu0 %192
    %v194 = vsel %vm44, %v193, 0
    %196 = vmatprep.subr.mxu0 0.0
    %197 = vmatpush1.msra.mxu0 %v28
    %198 = vmatprep.subr.mxu0 0.0
    %199 = vmatpush1.msra.mxu0 0.0
    %200 = vmatprep.subr.mxu0 0.0
    %201 = vmatpush1.msra.mxu0 0.0
    %202 = vmatprep.subr.mxu0 0.0
    %203 = vmatpush1.msra.mxu0 0.0
    %204 = vmatprep.subr.mxu0 0.0
    %205 = vmatpush1.msra.mxu0 0.0
    %206 = vmatprep.subr.mxu0 0.0
    %207 = vmatpush1.msra.mxu0 0.0
    %208 = vmatprep.subr.mxu0 0.0
    %209 = vmatpush1.msra.mxu0 0.0
    %210 = vmatprep.subr.mxu0 0.0
    %211 = vmatpush1.msra.mxu0 0.0
    %212 = vmatprep.subr.mxu0 0.0
    %213 = vmatpush1.msra.mxu0 0.0
    %214 = vmatprep.subr.mxu0 0.0
    %215 = vmatpush1.msra.mxu0 0.0
    %216 = vmatprep.subr.mxu0 0.0
    %217 = vmatpush1.msra.mxu0 0.0
    %218 = vmatprep.subr.mxu0 0.0
    %219 = vmatpush1.msra.mxu0 0.0
    %220 = vmatprep.subr.mxu0 0.0
    %221 = vmatpush1.msra.mxu0 0.0
    %222 = vmatprep.subr.mxu0 0.0
    %223 = vmatpush1.msra.mxu0 0.0
    %224 = vmatprep.subr.mxu0 0.0
    %225 = vmatpush1.msra.mxu0 0.0
    %226 = vmatprep.subr.mxu0 0.0
    %227 = vmatpush1.msra.mxu0 0.0
    %228 = vmatprep.subr.mxu0 0.0
    %229 = vmatpush1.msra.mxu0 0.0
    %230 = vmatprep.subr.mxu0 0.0
    %231 = vmatpush1.msra.mxu0 0.0
    %232 = vmatprep.subr.mxu0 0.0
    %233 = vmatpush1.msra.mxu0 0.0
    %234 = vmatprep.subr.mxu0 0.0
    %235 = vmatpush1.msra.mxu0 0.0
    %236 = vmatprep.subr.mxu0 0.0
    %237 = vmatpush1.msra.mxu0 0.0
    %238 = vmatprep.subr.mxu0 0.0
    %239 = vmatpush1.msra.mxu0 0.0
    %240 = vmatprep.subr.mxu0 0.0
    %241 = vmatpush1.msra.mxu0 0.0
    %242 = vmatprep.subr.mxu0 0.0
    %243 = vmatpush1.msra.mxu0 0.0
    %244 = vmatprep.subr.mxu0 0.0
    %245 = vmatpush1.msra.mxu0 0.0
    %246 = vmatprep.subr.mxu0 0.0
    %247 = vmatpush1.msra.mxu0 0.0
    %248 = vmatprep.subr.mxu0 0.0
    %249 = vmatpush1.msra.mxu0 0.0
    %250 = vmatprep.subr.mxu0 0.0
    %251 = vmatpush1.msra.mxu0 0.0
    %252 = vmatprep.subr.mxu0 0.0
    %253 = vmatpush1.msra.mxu0 0.0
    %254 = vmatprep.subr.mxu0 0.0
    %255 = vmatpush1.msra.mxu0 0.0
    %256 = vmatprep.subr.mxu0 0.0
    %257 = vmatpush1.msra.mxu0 0.0
    %258 = vmatprep.subr.mxu0 0.0
    %259 = vmatpush1.msra.mxu0 0.0
    %260 = vmatprep.mubr.f32.mxu0 0.0
    %261 = vmatmul.mubr.f32.gmra.mrb[0].mxu0 %v194
    %v262 = vpop.f32.mrb[0].mxu0
    %v263 = vadd.f32 %v43, %v262
    %v264 = vpop.f32.mrb[0].mxu0
    %265 = vdwg.mxu0
    %266 = vrot.lane.b32.xlu0 %v39, 104
    %v267 = vpop.permute.xlu0 %266
    %v268 = vsel %vm44, %v267, 0
    %270 = vmatprep.subr.mxu0 0.0
    %271 = vmatpush1.msra.mxu0 %v28
    %272 = vmatprep.subr.mxu0 0.0
    %273 = vmatpush1.msra.mxu0 0.0
    %274 = vmatprep.subr.mxu0 0.0
    %275 = vmatpush1.msra.mxu0 0.0
    %276 = vmatprep.subr.mxu0 0.0
    %277 = vmatpush1.msra.mxu0 0.0
    %278 = vmatprep.subr.mxu0 0.0
    %279 = vmatpush1.msra.mxu0 0.0
    %280 = vmatprep.subr.mxu0 0.0
    %281 = vmatpush1.msra.mxu0 0.0
    %282 = vmatprep.subr.mxu0 0.0
    %283 = vmatpush1.msra.mxu0 0.0
    %284 = vmatprep.subr.mxu0 0.0
    %285 = vmatpush1.msra.mxu0 0.0
    %286 = vmatprep.subr.mxu0 0.0
    %287 = vmatpush1.msra.mxu0 0.0
    %288 = vmatprep.subr.mxu0 0.0
    %289 = vmatpush1.msra.mxu0 0.0
    %290 = vmatprep.subr.mxu0 0.0
    %291 = vmatpush1.msra.mxu0 0.0
    %292 = vmatprep.subr.mxu0 0.0
    %293 = vmatpush1.msra.mxu0 0.0
    %294 = vmatprep.subr.mxu0 0.0
    %295 = vmatpush1.msra.mxu0 0.0
    %296 = vmatprep.subr.mxu0 0.0
    %297 = vmatpush1.msra.mxu0 0.0
    %298 = vmatprep.subr.mxu0 0.0
    %299 = vmatpush1.msra.mxu0 0.0
    %300 = vmatprep.subr.mxu0 0.0
    %301 = vmatpush1.msra.mxu0 0.0
    %302 = vmatprep.subr.mxu0 0.0
    %303 = vmatpush1.msra.mxu0 0.0
    %304 = vmatprep.subr.mxu0 0.0
    %305 = vmatpush1.msra.mxu0 0.0
    %306 = vmatprep.subr.mxu0 0.0
    %307 = vmatpush1.msra.mxu0 0.0
    %308 = vmatprep.subr.mxu0 0.0
    %309 = vmatpush1.msra.mxu0 0.0
    %310 = vmatprep.subr.mxu0 0.0
    %311 = vmatpush1.msra.mxu0 0.0
    %312 = vmatprep.subr.mxu0 0.0
    %313 = vmatpush1.msra.mxu0 0.0
    %314 = vmatprep.subr.mxu0 0.0
    %315 = vmatpush1.msra.mxu0 0.0
    %316 = vmatprep.subr.mxu0 0.0
    %317 = vmatpush1.msra.mxu0 0.0
    %318 = vmatprep.subr.mxu0 0.0
    %319 = vmatpush1.msra.mxu0 0.0
    %320 = vmatprep.subr.mxu0 0.0
    %321 = vmatpush1.msra.mxu0 0.0
    %322 = vmatprep.subr.mxu0 0.0
    %323 = vmatpush1.msra.mxu0 0.0
    %324 = vmatprep.subr.mxu0 0.0
    %325 = vmatpush1.msra.mxu0 0.0
    %326 = vmatprep.subr.mxu0 0.0
    %327 = vmatpush1.msra.mxu0 0.0
    %328 = vmatprep.subr.mxu0 0.0
    %329 = vmatpush1.msra.mxu0 0.0
    %330 = vmatprep.subr.mxu0 0.0
    %331 = vmatpush1.msra.mxu0 0.0
    %332 = vmatprep.subr.mxu0 0.0
    %333 = vmatpush1.msra.mxu0 0.0
    %334 = vmatprep.mubr.f32.mxu0 0.0
    %335 = vmatmul.mubr.f32.gmra.mrb[0].mxu0 %v268
    %v336 = vpop.f32.mrb[0].mxu0
    %v337 = vadd.f32 %v43, %v336
    %v338 = vpop.f32.mrb[0].mxu0
    %339 = vdwg.mxu0
    %340 = vrot.lane.b32.xlu0 %v39, 96
    %v341 = vpop.permute.xlu0 %340
    %v342 = vsel %vm44, %v341, 0
    %344 = vmatprep.subr.mxu0 0.0
    %345 = vmatpush1.msra.mxu0 %v28
    %346 = vmatprep.subr.mxu0 0.0
    %347 = vmatpush1.msra.mxu0 0.0
    %348 = vmatprep.subr.mxu0 0.0
    %349 = vmatpush1.msra.mxu0 0.0
    %350 = vmatprep.subr.mxu0 0.0
    %351 = vmatpush1.msra.mxu0 0.0
    %352 = vmatprep.subr.mxu0 0.0
    %353 = vmatpush1.msra.mxu0 0.0
    %354 = vmatprep.subr.mxu0 0.0
    %355 = vmatpush1.msra.mxu0 0.0
    %356 = vmatprep.subr.mxu0 0.0
    %357 = vmatpush1.msra.mxu0 0.0
    %358 = vmatprep.subr.mxu0 0.0
    %359 = vmatpush1.msra.mxu0 0.0
    %360 = vmatprep.subr.mxu0 0.0
    %361 = vmatpush1.msra.mxu0 0.0
    %362 = vmatprep.subr.mxu0 0.0
    %363 = vmatpush1.msra.mxu0 0.0
    %364 = vmatprep.subr.mxu0 0.0
    %365 = vmatpush1.msra.mxu0 0.0
    %366 = vmatprep.subr.mxu0 0.0
    %367 = vmatpush1.msra.mxu0 0.0
    %368 = vmatprep.subr.mxu0 0.0
    %369 = vmatpush1.msra.mxu0 0.0
    %370 = vmatprep.subr.mxu0 0.0
    %371 = vmatpush1.msra.mxu0 0.0
    %372 = vmatprep.subr.mxu0 0.0
    %373 = vmatpush1.msra.mxu0 0.0
    %374 = vmatprep.subr.mxu0 0.0
    %375 = vmatpush1.msra.mxu0 0.0
    %376 = vmatprep.subr.mxu0 0.0
    %377 = vmatpush1.msra.mxu0 0.0
    %378 = vmatprep.subr.mxu0 0.0
    %379 = vmatpush1.msra.mxu0 0.0
    %380 = vmatprep.subr.mxu0 0.0
    %381 = vmatpush1.msra.mxu0 0.0
    %382 = vmatprep.subr.mxu0 0.0
    %383 = vmatpush1.msra.mxu0 0.0
    %384 = vmatprep.subr.mxu0 0.0
    %385 = vmatpush1.msra.mxu0 0.0
    %386 = vmatprep.subr.mxu0 0.0
    %387 = vmatpush1.msra.mxu0 0.0
    %388 = vmatprep.subr.mxu0 0.0
    %389 = vmatpush1.msra.mxu0 0.0
    %390 = vmatprep.subr.mxu0 0.0
    %391 = vmatpush1.msra.mxu0 0.0
    %392 = vmatprep.subr.mxu0 0.0
    %393 = vmatpush1.msra.mxu0 0.0
    %394 = vmatprep.subr.mxu0 0.0
    %395 = vmatpush1.msra.mxu0 0.0
    %396 = vmatprep.subr.mxu0 0.0
    %397 = vmatpush1.msra.mxu0 0.0
    %398 = vmatprep.subr.mxu0 0.0
    %399 = vmatpush1.msra.mxu0 0.0
    %400 = vmatprep.subr.mxu0 0.0
    %401 = vmatpush1.msra.mxu0 0.0
    %402 = vmatprep.subr.mxu0 0.0
    %403 = vmatpush1.msra.mxu0 0.0
    %404 = vmatprep.subr.mxu0 0.0
    %405 = vmatpush1.msra.mxu0 0.0
    %406 = vmatprep.subr.mxu0 0.0
    %407 = vmatpush1.msra.mxu0 0.0
    %408 = vmatprep.mubr.f32.mxu0 0.0
    %409 = vmatmul.mubr.f32.gmra.mrb[0].mxu0 %v342
    %v410 = vpop.f32.mrb[0].mxu0
    %v411 = vadd.f32 %v43, %v410
    %v412 = vpop.f32.mrb[0].mxu0
    %413 = vdwg.mxu0
    %414 = vrot.lane.b32.xlu0 %v39, 88
    %v415 = vpop.permute.xlu0 %414
    %v416 = vsel %vm44, %v415, 0
    %418 = vmatprep.subr.mxu0 0.0
    %419 = vmatpush1.msra.mxu0 %v28
    %420 = vmatprep.subr.mxu0 0.0
    %421 = vmatpush1.msra.mxu0 0.0
    %422 = vmatprep.subr.mxu0 0.0
    %423 = vmatpush1.msra.mxu0 0.0
    %424 = vmatprep.subr.mxu0 0.0
    %425 = vmatpush1.msra.mxu0 0.0
    %426 = vmatprep.subr.mxu0 0.0
    %427 = vmatpush1.msra.mxu0 0.0
    %428 = vmatprep.subr.mxu0 0.0
    %429 = vmatpush1.msra.mxu0 0.0
    %430 = vmatprep.subr.mxu0 0.0
    %431 = vmatpush1.msra.mxu0 0.0
    %432 = vmatprep.subr.mxu0 0.0
    %433 = vmatpush1.msra.mxu0 0.0
    %434 = vmatprep.subr.mxu0 0.0
    %435 = vmatpush1.msra.mxu0 0.0
    %436 = vmatprep.subr.mxu0 0.0
    %437 = vmatpush1.msra.mxu0 0.0
    %438 = vmatprep.subr.mxu0 0.0
    %439 = vmatpush1.msra.mxu0 0.0
    %440 = vmatprep.subr.mxu0 0.0
    %441 = vmatpush1.msra.mxu0 0.0
    %442 = vmatprep.subr.mxu0 0.0
    %443 = vmatpush1.msra.mxu0 0.0
    %444 = vmatprep.subr.mxu0 0.0
    %445 = vmatpush1.msra.mxu0 0.0
    %446 = vmatprep.subr.mxu0 0.0
    %447 = vmatpush1.msra.mxu0 0.0
    %448 = vmatprep.subr.mxu0 0.0
    %449 = vmatpush1.msra.mxu0 0.0
    %450 = vmatprep.subr.mxu0 0.0
    %451 = vmatpush1.msra.mxu0 0.0
    %452 = vmatprep.subr.mxu0 0.0
    %453 = vmatpush1.msra.mxu0 0.0
    %454 = vmatprep.subr.mxu0 0.0
    %455 = vmatpush1.msra.mxu0 0.0
    %456 = vmatprep.subr.mxu0 0.0
    %457 = vmatpush1.msra.mxu0 0.0
    %458 = vmatprep.subr.mxu0 0.0
    %459 = vmatpush1.msra.mxu0 0.0
    %460 = vmatprep.subr.mxu0 0.0
    %461 = vmatpush1.msra.mxu0 0.0
    %462 = vmatprep.subr.mxu0 0.0
    %463 = vmatpush1.msra.mxu0 0.0
    %464 = vmatprep.subr.mxu0 0.0
    %465 = vmatpush1.msra.mxu0 0.0
    %466 = vmatprep.subr.mxu0 0.0
    %467 = vmatpush1.msra.mxu0 0.0
    %468 = vmatprep.subr.mxu0 0.0
    %469 = vmatpush1.msra.mxu0 0.0
    %470 = vmatprep.subr.mxu0 0.0
    %471 = vmatpush1.msra.mxu0 0.0
    %472 = vmatprep.subr.mxu0 0.0
    %473 = vmatpush1.msra.mxu0 0.0
    %474 = vmatprep.subr.mxu0 0.0
    %475 = vmatpush1.msra.mxu0 0.0
    %476 = vmatprep.subr.mxu0 0.0
    %477 = vmatpush1.msra.mxu0 0.0
    %478 = vmatprep.subr.mxu0 0.0
    %479 = vmatpush1.msra.mxu0 0.0
    %480 = vmatprep.subr.mxu0 0.0
    %481 = vmatpush1.msra.mxu0 0.0
    %482 = vmatprep.mubr.f32.mxu0 0.0
    %483 = vmatmul.mubr.f32.gmra.mrb[0].mxu0 %v416
    %v484 = vpop.f32.mrb[0].mxu0
    %v485 = vadd.f32 %v43, %v484
    %v486 = vpop.f32.mrb[0].mxu0
    %487 = vdwg.mxu0
    %488 = vrot.lane.b32.xlu0 %v39, 80
    %v489 = vpop.permute.xlu0 %488
    %v490 = vsel %vm44, %v489, 0
    %492 = vmatprep.subr.mxu0 0.0
    %493 = vmatpush1.msra.mxu0 %v28
    %494 = vmatprep.subr.mxu0 0.0
    %495 = vmatpush1.msra.mxu0 0.0
    %496 = vmatprep.subr.mxu0 0.0
    %497 = vmatpush1.msra.mxu0 0.0
    %498 = vmatprep.subr.mxu0 0.0
    %499 = vmatpush1.msra.mxu0 0.0
    %500 = vmatprep.subr.mxu0 0.0
    %501 = vmatpush1.msra.mxu0 0.0
    %502 = vmatprep.subr.mxu0 0.0
    %503 = vmatpush1.msra.mxu0 0.0
    %504 = vmatprep.subr.mxu0 0.0
    %505 = vmatpush1.msra.mxu0 0.0
    %506 = vmatprep.subr.mxu0 0.0
    %507 = vmatpush1.msra.mxu0 0.0
    %508 = vmatprep.subr.mxu0 0.0
    %509 = vmatpush1.msra.mxu0 0.0
    %510 = vmatprep.subr.mxu0 0.0
    %511 = vmatpush1.msra.mxu0 0.0
    %512 = vmatprep.subr.mxu0 0.0
    %513 = vmatpush1.msra.mxu0 0.0
    %514 = vmatprep.subr.mxu0 0.0
    %515 = vmatpush1.msra.mxu0 0.0
    %516 = vmatprep.subr.mxu0 0.0
    %517 = vmatpush1.msra.mxu0 0.0
    %518 = vmatprep.subr.mxu0 0.0
    %519 = vmatpush1.msra.mxu0 0.0
    %520 = vmatprep.subr.mxu0 0.0
    %521 = vmatpush1.msra.mxu0 0.0
    %522 = vmatprep.subr.mxu0 0.0
    %523 = vmatpush1.msra.mxu0 0.0
    %524 = vmatprep.subr.mxu0 0.0
    %525 = vmatpush1.msra.mxu0 0.0
    %526 = vmatprep.subr.mxu0 0.0
    %527 = vmatpush1.msra.mxu0 0.0
    %528 = vmatprep.subr.mxu0 0.0
    %529 = vmatpush1.msra.mxu0 0.0
    %530 = vmatprep.subr.mxu0 0.0
    %531 = vmatpush1.msra.mxu0 0.0
    %532 = vmatprep.subr.mxu0 0.0
    %533 = vmatpush1.msra.mxu0 0.0
    %534 = vmatprep.subr.mxu0 0.0
    %535 = vmatpush1.msra.mxu0 0.0
    %536 = vmatprep.subr.mxu0 0.0
    %537 = vmatpush1.msra.mxu0 0.0
    %538 = vmatprep.subr.mxu0 0.0
    %539 = vmatpush1.msra.mxu0 0.0
    %540 = vmatprep.subr.mxu0 0.0
    %541 = vmatpush1.msra.mxu0 0.0
    %542 = vmatprep.subr.mxu0 0.0
    %543 = vmatpush1.msra.mxu0 0.0
    %544 = vmatprep.subr.mxu0 0.0
    %545 = vmatpush1.msra.mxu0 0.0
    %546 = vmatprep.subr.mxu0 0.0
    %547 = vmatpush1.msra.mxu0 0.0
    %548 = vmatprep.subr.mxu0 0.0
    %549 = vmatpush1.msra.mxu0 0.0
    %550 = vmatprep.subr.mxu0 0.0
    %551 = vmatpush1.msra.mxu0 0.0
    %552 = vmatprep.subr.mxu0 0.0
    %553 = vmatpush1.msra.mxu0 0.0
    %554 = vmatprep.subr.mxu0 0.0
    %555 = vmatpush1.msra.mxu0 0.0
    %556 = vmatprep.mubr.f32.mxu0 0.0
    %557 = vmatmul.mubr.f32.gmra.mrb[0].mxu0 %v490
    %v558 = vpop.f32.mrb[0].mxu0
    %v559 = vadd.f32 %v43, %v558
    %v560 = vpop.f32.mrb[0].mxu0
    %561 = vdwg.mxu0
    %562 = vrot.lane.b32.xlu0 %v39, 72
    %v563 = vpop.permute.xlu0 %562
    %v564 = vsel %vm44, %v563, 0
    %566 = vmatprep.subr.mxu0 0.0
    %567 = vmatpush1.msra.mxu0 %v28
    %568 = vmatprep.subr.mxu0 0.0
    %569 = vmatpush1.msra.mxu0 0.0
    %570 = vmatprep.subr.mxu0 0.0
    %571 = vmatpush1.msra.mxu0 0.0
    %572 = vmatprep.subr.mxu0 0.0
    %573 = vmatpush1.msra.mxu0 0.0
    %574 = vmatprep.subr.mxu0 0.0
    %575 = vmatpush1.msra.mxu0 0.0
    %576 = vmatprep.subr.mxu0 0.0
    %577 = vmatpush1.msra.mxu0 0.0
    %578 = vmatprep.subr.mxu0 0.0
    %579 = vmatpush1.msra.mxu0 0.0
    %580 = vmatprep.subr.mxu0 0.0
    %581 = vmatpush1.msra.mxu0 0.0
    %582 = vmatprep.subr.mxu0 0.0
    %583 = vmatpush1.msra.mxu0 0.0
    %584 = vmatprep.subr.mxu0 0.0
    %585 = vmatpush1.msra.mxu0 0.0
    %586 = vmatprep.subr.mxu0 0.0
    %587 = vmatpush1.msra.mxu0 0.0
    %588 = vmatprep.subr.mxu0 0.0
    %589 = vmatpush1.msra.mxu0 0.0
    %590 = vmatprep.subr.mxu0 0.0
    %591 = vmatpush1.msra.mxu0 0.0
    %592 = vmatprep.subr.mxu0 0.0
    %593 = vmatpush1.msra.mxu0 0.0
    %594 = vmatprep.subr.mxu0 0.0
    %595 = vmatpush1.msra.mxu0 0.0
    %596 = vmatprep.subr.mxu0 0.0
    %597 = vmatpush1.msra.mxu0 0.0
    %598 = vmatprep.subr.mxu0 0.0
    %599 = vmatpush1.msra.mxu0 0.0
    %600 = vmatprep.subr.mxu0 0.0
    %601 = vmatpush1.msra.mxu0 0.0
    %602 = vmatprep.subr.mxu0 0.0
    %603 = vmatpush1.msra.mxu0 0.0
    %604 = vmatprep.subr.mxu0 0.0
    %605 = vmatpush1.msra.mxu0 0.0
    %606 = vmatprep.subr.mxu0 0.0
    %607 = vmatpush1.msra.mxu0 0.0
    %608 = vmatprep.subr.mxu0 0.0
    %609 = vmatpush1.msra.mxu0 0.0
    %610 = vmatprep.subr.mxu0 0.0
    %611 = vmatpush1.msra.mxu0 0.0
    %612 = vmatprep.subr.mxu0 0.0
    %613 = vmatpush1.msra.mxu0 0.0
    %614 = vmatprep.subr.mxu0 0.0
    %615 = vmatpush1.msra.mxu0 0.0
    %616 = vmatprep.subr.mxu0 0.0
    %617 = vmatpush1.msra.mxu0 0.0
    %618 = vmatprep.subr.mxu0 0.0
    %619 = vmatpush1.msra.mxu0 0.0
    %620 = vmatprep.subr.mxu0 0.0
    %621 = vmatpush1.msra.mxu0 0.0
    %622 = vmatprep.subr.mxu0 0.0
    %623 = vmatpush1.msra.mxu0 0.0
    %624 = vmatprep.subr.mxu0 0.0
    %625 = vmatpush1.msra.mxu0 0.0
    %626 = vmatprep.subr.mxu0 0.0
    %627 = vmatpush1.msra.mxu0 0.0
    %628 = vmatprep.subr.mxu0 0.0
    %629 = vmatpush1.msra.mxu0 0.0
    %630 = vmatprep.mubr.f32.mxu0 0.0
    %631 = vmatmul.mubr.f32.gmra.mrb[0].mxu0 %v564
    %v632 = vpop.f32.mrb[0].mxu0
    %v633 = vadd.f32 %v43, %v632
    %v634 = vpop.f32.mrb[0].mxu0
    %635 = vdwg.mxu0
    %v636 = vld [vmem:[%s2] sm:$0xff]
    %vm637 = vcmask 261120
    %v639 = vsel %vm637, %v636, 0
    %641 = vmatprep.subr.mxu0 0.0
    %642 = vmatpush1.msra.mxu0 %v29
    %643 = vmatprep.subr.mxu0 0.0
    %644 = vmatpush1.msra.mxu0 %v30
    %645 = vmatprep.subr.mxu0 0.0
    %646 = vmatpush1.msra.mxu0 %v31
    %647 = vmatprep.subr.mxu0 0.0
    %648 = vmatpush1.msra.mxu0 %v32
    %649 = vmatprep.subr.mxu0 0.0
    %650 = vmatpush1.msra.mxu0 0.0
    %651 = vmatprep.subr.mxu0 0.0
    %652 = vmatpush1.msra.mxu0 0.0
    %653 = vmatprep.subr.mxu0 0.0
    %654 = vmatpush1.msra.mxu0 0.0
    %655 = vmatprep.subr.mxu0 0.0
    %656 = vmatpush1.msra.mxu0 0.0
    %657 = vmatprep.subr.mxu0 0.0
    %658 = vmatpush1.msra.mxu0 0.0
    %659 = vmatprep.subr.mxu0 0.0
    %660 = vmatpush1.msra.mxu0 0.0
    %661 = vmatprep.subr.mxu0 0.0
    %662 = vmatpush1.msra.mxu0 0.0
    %663 = vmatprep.subr.mxu0 0.0
    %664 = vmatpush1.msra.mxu0 0.0
    %665 = vmatprep.subr.mxu0 0.0
    %666 = vmatpush1.msra.mxu0 0.0
    %667 = vmatprep.subr.mxu0 0.0
    %668 = vmatpush1.msra.mxu0 0.0
    %669 = vmatprep.subr.mxu0 0.0
    %670 = vmatpush1.msra.mxu0 0.0
    %671 = vmatprep.subr.mxu0 0.0
    %672 = vmatpush1.msra.mxu0 0.0
    %673 = vmatprep.subr.mxu0 0.0
    %674 = vmatpush1.msra.mxu0 0.0
    %675 = vmatprep.subr.mxu0 0.0
    %676 = vmatpush1.msra.mxu0 0.0
    %677 = vmatprep.subr.mxu0 0.0
    %678 = vmatpush1.msra.mxu0 0.0
    %679 = vmatprep.subr.mxu0 0.0
    %680 = vmatpush1.msra.mxu0 0.0
    %681 = vmatprep.subr.mxu0 0.0
    %682 = vmatpush1.msra.mxu0 0.0
    %683 = vmatprep.subr.mxu0 0.0
    %684 = vmatpush1.msra.mxu0 0.0
    %685 = vmatprep.subr.mxu0 0.0
    %686 = vmatpush1.msra.mxu0 0.0
    %687 = vmatprep.subr.mxu0 0.0
    %688 = vmatpush1.msra.mxu0 0.0
    %689 = vmatprep.subr.mxu0 0.0
    %690 = vmatpush1.msra.mxu0 0.0
    %691 = vmatprep.subr.mxu0 0.0
    %692 = vmatpush1.msra.mxu0 0.0
    %693 = vmatprep.subr.mxu0 0.0
    %694 = vmatpush1.msra.mxu0 0.0
    %695 = vmatprep.subr.mxu0 0.0
    %696 = vmatpush1.msra.mxu0 0.0
    %697 = vmatprep.subr.mxu0 0.0
    %698 = vmatpush1.msra.mxu0 0.0
    %699 = vmatprep.subr.mxu0 0.0
    %700 = vmatpush1.msra.mxu0 0.0
    %701 = vmatprep.subr.mxu0 0.0
    %702 = vmatpush1.msra.mxu0 0.0
    %703 = vmatprep.subr.mxu0 0.0
    %704 = vmatpush1.msra.mxu0 0.0
    %705 = vmatprep.mubr.f32.mxu0 0.0
    %706 = vmatmul.mubr.f32.gmra.mrb[0].mxu0 %v639
    %v707 = vpop.f32.mrb[0].mxu0
    %v708 = vadd.f32 0.0, %v707
    %v709 = vpop.f32.mrb[0].mxu0
    %710 = vdwg.mxu0
    %v711 = vadd.f32 %v115, %v708
    %v712 = vtanh.pop %v711
    %713 = vst.msk [vmem:[%s3] sm:$0xff] %vm637, %v712
    %v715 = vsel %vm637, %v712, 0
    %717 = vmatprep.subr.mxu0 0.0
    %718 = vmatpush1.msra.mxu0 %v29
    %719 = vmatprep.subr.mxu0 0.0
    %720 = vmatpush1.msra.mxu0 %v30
    %721 = vmatprep.subr.mxu0 0.0
    %722 = vmatpush1.msra.mxu0 %v31
    %723 = vmatprep.subr.mxu0 0.0
    %724 = vmatpush1.msra.mxu0 %v32
    %725 = vmatprep.subr.mxu0 0.0
    %726 = vmatpush1.msra.mxu0 0.0
    %727 = vmatprep.subr.mxu0 0.0
    %728 = vmatpush1.msra.mxu0 0.0
    %729 = vmatprep.subr.mxu0 0.0
    %730 = vmatpush1.msra.mxu0 0.0
    %731 = vmatprep.subr.mxu0 0.0
    %732 = vmatpush1.msra.mxu0 0.0
    %733 = vmatprep.subr.mxu0 0.0
    %734 = vmatpush1.msra.mxu0 0.0
    %735 = vmatprep.subr.mxu0 0.0
    %736 = vmatpush1.msra.mxu0 0.0
    %737 = vmatprep.subr.mxu0 0.0
    %738 = vmatpush1.msra.mxu0 0.0
    %739 = vmatprep.subr.mxu0 0.0
    %740 = vmatpush1.msra.mxu0 0.0
    %741 = vmatprep.subr.mxu0 0.0
    %742 = vmatpush1.msra.mxu0 0.0
    %743 = vmatprep.subr.mxu0 0.0
    %744 = vmatpush1.msra.mxu0 0.0
    %745 = vmatprep.subr.mxu0 0.0
    %746 = vmatpush1.msra.mxu0 0.0
    %747 = vmatprep.subr.mxu0 0.0
    %748 = vmatpush1.msra.mxu0 0.0
    %749 = vmatprep.subr.mxu0 0.0
    %750 = vmatpush1.msra.mxu0 0.0
    %751 = vmatprep.subr.mxu0 0.0
    %752 = vmatpush1.msra.mxu0 0.0
    %753 = vmatprep.subr.mxu0 0.0
    %754 = vmatpush1.msra.mxu0 0.0
    %755 = vmatprep.subr.mxu0 0.0
    %756 = vmatpush1.msra.mxu0 0.0
    %757 = vmatprep.subr.mxu0 0.0
    %758 = vmatpush1.msra.mxu0 0.0
    %759 = vmatprep.subr.mxu0 0.0
    %760 = vmatpush1.msra.mxu0 0.0
    %761 = vmatprep.subr.mxu0 0.0
    %762 = vmatpush1.msra.mxu0 0.0
    %763 = vmatprep.subr.mxu0 0.0
    %764 = vmatpush1.msra.mxu0 0.0
    %765 = vmatprep.subr.mxu0 0.0
    %766 = vmatpush1.msra.mxu0 0.0
    %767 = vmatprep.subr.mxu0 0.0
    %768 = vmatpush1.msra.mxu0 0.0
    %769 = vmatprep.subr.mxu0 0.0
    %770 = vmatpush1.msra.mxu0 0.0
    %771 = vmatprep.subr.mxu0 0.0
    %772 = vmatpush1.msra.mxu0 0.0
    %773 = vmatprep.subr.mxu0 0.0
    %774 = vmatpush1.msra.mxu0 0.0
    %775 = vmatprep.subr.mxu0 0.0
    %776 = vmatpush1.msra.mxu0 0.0
    %777 = vmatprep.subr.mxu0 0.0
    %778 = vmatpush1.msra.mxu0 0.0
    %779 = vmatprep.subr.mxu0 0.0
    %780 = vmatpush1.msra.mxu0 0.0
    %781 = vmatprep.mubr.f32.mxu0 0.0
    %782 = vmatmul.mubr.f32.gmra.mrb[0].mxu0 %v715
    %v783 = vpop.f32.mrb[0].mxu0
    %v784 = vadd.f32 0.0, %v783
    %v785 = vpop.f32.mrb[0].mxu0
    %786 = vdwg.mxu0
    %v787 = vadd.f32 %v189, %v784
    %v788 = vtanh.pop %v787
    %790 = vrot.lane.b32.xlu0 %v788, 32
    %v791 = vpop.permute.xlu0 %790
    %vm793 = vcmask 523520
    %794 = vst.msk [vmem:[%s3] sm:$0xff] %vm793, %v791
    %v795 = vsel %vm637, %v788, 0
    %797 = vmatprep.subr.mxu0 0.0
    %798 = vmatpush1.msra.mxu0 %v29
    %799 = vmatprep.subr.mxu0 0.0
    %800 = vmatpush1.msra.mxu0 %v30
    %801 = vmatprep.subr.mxu0 0.0
    %802 = vmatpush1.msra.mxu0 %v31
    %803 = vmatprep.subr.mxu0 0.0
    %804 = vmatpush1.msra.mxu0 %v32
    %805 = vmatprep.subr.mxu0 0.0
    %806 = vmatpush1.msra.mxu0 0.0
    %807 = vmatprep.subr.mxu0 0.0
    %808 = vmatpush1.msra.mxu0 0.0
    %809 = vmatprep.subr.mxu0 0.0
    %810 = vmatpush1.msra.mxu0 0.0
    %811 = vmatprep.subr.mxu0 0.0
    %812 = vmatpush1.msra.mxu0 0.0
    %813 = vmatprep.subr.mxu0 0.0
    %814 = vmatpush1.msra.mxu0 0.0
    %815 = vmatprep.subr.mxu0 0.0
    %816 = vmatpush1.msra.mxu0 0.0
    %817 = vmatprep.subr.mxu0 0.0
    %818 = vmatpush1.msra.mxu0 0.0
    %819 = vmatprep.subr.mxu0 0.0
    %820 = vmatpush1.msra.mxu0 0.0
    %821 = vmatprep.subr.mxu0 0.0
    %822 = vmatpush1.msra.mxu0 0.0
    %823 = vmatprep.subr.mxu0 0.0
    %824 = vmatpush1.msra.mxu0 0.0
    %825 = vmatprep.subr.mxu0 0.0
    %826 = vmatpush1.msra.mxu0 0.0
    %827 = vmatprep.subr.mxu0 0.0
    %828 = vmatpush1.msra.mxu0 0.0
    %829 = vmatprep.subr.mxu0 0.0
    %830 = vmatpush1.msra.mxu0 0.0
    %831 = vmatprep.subr.mxu0 0.0
    %832 = vmatpush1.msra.mxu0 0.0
    %833 = vmatprep.subr.mxu0 0.0
    %834 = vmatpush1.msra.mxu0 0.0
    %835 = vmatprep.subr.mxu0 0.0
    %836 = vmatpush1.msra.mxu0 0.0
    %837 = vmatprep.subr.mxu0 0.0
    %838 = vmatpush1.msra.mxu0 0.0
    %839 = vmatprep.subr.mxu0 0.0
    %840 = vmatpush1.msra.mxu0 0.0
    %841 = vmatprep.subr.mxu0 0.0
    %842 = vmatpush1.msra.mxu0 0.0
    %843 = vmatprep.subr.mxu0 0.0
    %844 = vmatpush1.msra.mxu0 0.0
    %845 = vmatprep.subr.mxu0 0.0
    %846 = vmatpush1.msra.mxu0 0.0
    %847 = vmatprep.subr.mxu0 0.0
    %848 = vmatpush1.msra.mxu0 0.0
    %849 = vmatprep.subr.mxu0 0.0
    %850 = vmatpush1.msra.mxu0 0.0
    %851 = vmatprep.subr.mxu0 0.0
    %852 = vmatpush1.msra.mxu0 0.0
    %853 = vmatprep.subr.mxu0 0.0
    %854 = vmatpush1.msra.mxu0 0.0
    %855 = vmatprep.subr.mxu0 0.0
    %856 = vmatpush1.msra.mxu0 0.0
    %857 = vmatprep.subr.mxu0 0.0
    %858 = vmatpush1.msra.mxu0 0.0
    %859 = vmatprep.subr.mxu0 0.0
    %860 = vmatpush1.msra.mxu0 0.0
    %861 = vmatprep.mubr.f32.mxu0 0.0
    %862 = vmatmul.mubr.f32.gmra.mrb[0].mxu0 %v795
    %v863 = vpop.f32.mrb[0].mxu0
    %v864 = vadd.f32 0.0, %v863
    %v865 = vpop.f32.mrb[0].mxu0
    %866 = vdwg.mxu0
    %v867 = vadd.f32 %v263, %v864
    %v868 = vtanh.pop %v867
    %870 = vrot.lane.b32.xlu0 %v868, 64
    %v871 = vpop.permute.xlu0 %870
    %vm873 = vcmask 785920
    %874 = vst.msk [vmem:[%s3] sm:$0xff] %vm873, %v871
    %v875 = vsel %vm637, %v868, 0
    %877 = vmatprep.subr.mxu0 0.0
    %878 = vmatpush1.msra.mxu0 %v29
    %879 = vmatprep.subr.mxu0 0.0
    %880 = vmatpush1.msra.mxu0 %v30
    %881 = vmatprep.subr.mxu0 0.0
    %882 = vmatpush1.msra.mxu0 %v31
    %883 = vmatprep.subr.mxu0 0.0
    %884 = vmatpush1.msra.mxu0 %v32
    %885 = vmatprep.subr.mxu0 0.0
    %886 = vmatpush1.msra.mxu0 0.0
    %887 = vmatprep.subr.mxu0 0.0
    %888 = vmatpush1.msra.mxu0 0.0
    %889 = vmatprep.subr.mxu0 0.0
    %890 = vmatpush1.msra.mxu0 0.0
    %891 = vmatprep.subr.mxu0 0.0
    %892 = vmatpush1.msra.mxu0 0.0
    %893 = vmatprep.subr.mxu0 0.0
    %894 = vmatpush1.msra.mxu0 0.0
    %895 = vmatprep.subr.mxu0 0.0
    %896 = vmatpush1.msra.mxu0 0.0
    %897 = vmatprep.subr.mxu0 0.0
    %898 = vmatpush1.msra.mxu0 0.0
    %899 = vmatprep.subr.mxu0 0.0
    %900 = vmatpush1.msra.mxu0 0.0
    %901 = vmatprep.subr.mxu0 0.0
    %902 = vmatpush1.msra.mxu0 0.0
    %903 = vmatprep.subr.mxu0 0.0
    %904 = vmatpush1.msra.mxu0 0.0
    %905 = vmatprep.subr.mxu0 0.0
    %906 = vmatpush1.msra.mxu0 0.0
    %907 = vmatprep.subr.mxu0 0.0
    %908 = vmatpush1.msra.mxu0 0.0
    %909 = vmatprep.subr.mxu0 0.0
    %910 = vmatpush1.msra.mxu0 0.0
    %911 = vmatprep.subr.mxu0 0.0
    %912 = vmatpush1.msra.mxu0 0.0
    %913 = vmatprep.subr.mxu0 0.0
    %914 = vmatpush1.msra.mxu0 0.0
    %915 = vmatprep.subr.mxu0 0.0
    %916 = vmatpush1.msra.mxu0 0.0
    %917 = vmatprep.subr.mxu0 0.0
    %918 = vmatpush1.msra.mxu0 0.0
    %919 = vmatprep.subr.mxu0 0.0
    %920 = vmatpush1.msra.mxu0 0.0
    %921 = vmatprep.subr.mxu0 0.0
    %922 = vmatpush1.msra.mxu0 0.0
    %923 = vmatprep.subr.mxu0 0.0
    %924 = vmatpush1.msra.mxu0 0.0
    %925 = vmatprep.subr.mxu0 0.0
    %926 = vmatpush1.msra.mxu0 0.0
    %927 = vmatprep.subr.mxu0 0.0
    %928 = vmatpush1.msra.mxu0 0.0
    %929 = vmatprep.subr.mxu0 0.0
    %930 = vmatpush1.msra.mxu0 0.0
    %931 = vmatprep.subr.mxu0 0.0
    %932 = vmatpush1.msra.mxu0 0.0
    %933 = vmatprep.subr.mxu0 0.0
    %934 = vmatpush1.msra.mxu0 0.0
    %935 = vmatprep.subr.mxu0 0.0
    %936 = vmatpush1.msra.mxu0 0.0
    %937 = vmatprep.subr.mxu0 0.0
    %938 = vmatpush1.msra.mxu0 0.0
    %939 = vmatprep.subr.mxu0 0.0
    %940 = vmatpush1.msra.mxu0 0.0
    %941 = vmatprep.mubr.f32.mxu0 0.0
    %942 = vmatmul.mubr.f32.gmra.mrb[0].mxu0 %v875
    %v943 = vpop.f32.mrb[0].mxu0
    %v944 = vadd.f32 0.0, %v943
    %v945 = vpop.f32.mrb[0].mxu0
    %946 = vdwg.mxu0
    %v947 = vadd.f32 %v337, %v944
    %v948 = vtanh.pop %v947
    %950 = vrot.lane.b32.xlu0 %v948, 96
    %v951 = vpop.permute.xlu0 %950
    %vm953 = vcmask 1048320
    %954 = vst.msk [vmem:[%s3] sm:$0xff] %vm953, %v951
    %v955 = vsel %vm637, %v948, 0
    %957 = vmatprep.subr.mxu0 0.0
    %958 = vmatpush1.msra.mxu0 %v29
    %959 = vmatprep.subr.mxu0 0.0
    %960 = vmatpush1.msra.mxu0 %v30
    %961 = vmatprep.subr.mxu0 0.0
    %962 = vmatpush1.msra.mxu0 %v31
    %963 = vmatprep.subr.mxu0 0.0
    %964 = vmatpush1.msra.mxu0 %v32
    %965 = vmatprep.subr.mxu0 0.0
    %966 = vmatpush1.msra.mxu0 0.0
    %967 = vmatprep.subr.mxu0 0.0
    %968 = vmatpush1.msra.mxu0 0.0
    %969 = vmatprep.subr.mxu0 0.0
    %970 = vmatpush1.msra.mxu0 0.0
    %971 = vmatprep.subr.mxu0 0.0
    %972 = vmatpush1.msra.mxu0 0.0
    %973 = vmatprep.subr.mxu0 0.0
    %974 = vmatpush1.msra.mxu0 0.0
    %975 = vmatprep.subr.mxu0 0.0
    %976 = vmatpush1.msra.mxu0 0.0
    %977 = vmatprep.subr.mxu0 0.0
    %978 = vmatpush1.msra.mxu0 0.0
    %979 = vmatprep.subr.mxu0 0.0
    %980 = vmatpush1.msra.mxu0 0.0
    %981 = vmatprep.subr.mxu0 0.0
    %982 = vmatpush1.msra.mxu0 0.0
    %983 = vmatprep.subr.mxu0 0.0
    %984 = vmatpush1.msra.mxu0 0.0
    %985 = vmatprep.subr.mxu0 0.0
    %986 = vmatpush1.msra.mxu0 0.0
    %987 = vmatprep.subr.mxu0 0.0
    %988 = vmatpush1.msra.mxu0 0.0
    %989 = vmatprep.subr.mxu0 0.0
    %990 = vmatpush1.msra.mxu0 0.0
    %991 = vmatprep.subr.mxu0 0.0
    %992 = vmatpush1.msra.mxu0 0.0
    %993 = vmatprep.subr.mxu0 0.0
    %994 = vmatpush1.msra.mxu0 0.0
    %995 = vmatprep.subr.mxu0 0.0
    %996 = vmatpush1.msra.mxu0 0.0
    %997 = vmatprep.subr.mxu0 0.0
    %998 = vmatpush1.msra.mxu0 0.0
    %999 = vmatprep.subr.mxu0 0.0
    %1000 = vmatpush1.msra.mxu0 0.0
    %1001 = vmatprep.subr.mxu0 0.0
    %1002 = vmatpush1.msra.mxu0 0.0
    %1003 = vmatprep.subr.mxu0 0.0
    %1004 = vmatpush1.msra.mxu0 0.0
    %1005 = vmatprep.subr.mxu0 0.0
    %1006 = vmatpush1.msra.mxu0 0.0
    %1007 = vmatprep.subr.mxu0 0.0
    %1008 = vmatpush1.msra.mxu0 0.0
    %1009 = vmatprep.subr.mxu0 0.0
    %1010 = vmatpush1.msra.mxu0 0.0
    %1011 = vmatprep.subr.mxu0 0.0
    %1012 = vmatpush1.msra.mxu0 0.0
    %1013 = vmatprep.subr.mxu0 0.0
    %1014 = vmatpush1.msra.mxu0 0.0
    %1015 = vmatprep.subr.mxu0 0.0
    %1016 = vmatpush1.msra.mxu0 0.0
    %1017 = vmatprep.subr.mxu0 0.0
    %1018 = vmatpush1.msra.mxu0 0.0
    %1019 = vmatprep.subr.mxu0 0.0
    %1020 = vmatpush1.msra.mxu0 0.0
    %1021 = vmatprep.mubr.f32.mxu0 0.0
    %1022 = vmatmul.mubr.f32.gmra.mrb[0].mxu0 %v955
    %v1023 = vpop.f32.mrb[0].mxu0
    %v1024 = vadd.f32 0.0, %v1023
    %v1025 = vpop.f32.mrb[0].mxu0
    %1026 = vdwg.mxu0
    %v1027 = vadd.f32 %v411, %v1024
    %v1028 = vtanh.pop %v1027
    %1029 = vst.msk [vmem:[%s3 + $0x8] sm:$0xff] %vm637, %v1028
    %v1031 = vsel %vm637, %v1028, 0
    %1033 = vmatprep.subr.mxu0 0.0
    %1034 = vmatpush1.msra.mxu0 %v29
    %1035 = vmatprep.subr.mxu0 0.0
    %1036 = vmatpush1.msra.mxu0 %v30
    %1037 = vmatprep.subr.mxu0 0.0
    %1038 = vmatpush1.msra.mxu0 %v31
    %1039 = vmatprep.subr.mxu0 0.0
    %1040 = vmatpush1.msra.mxu0 %v32
    %1041 = vmatprep.subr.mxu0 0.0
    %1042 = vmatpush1.msra.mxu0 0.0
    %1043 = vmatprep.subr.mxu0 0.0
    %1044 = vmatpush1.msra.mxu0 0.0
    %1045 = vmatprep.subr.mxu0 0.0
    %1046 = vmatpush1.msra.mxu0 0.0
    %1047 = vmatprep.subr.mxu0 0.0
    %1048 = vmatpush1.msra.mxu0 0.0
    %1049 = vmatprep.subr.mxu0 0.0
    %1050 = vmatpush1.msra.mxu0 0.0
    %1051 = vmatprep.subr.mxu0 0.0
    %1052 = vmatpush1.msra.mxu0 0.0
    %1053 = vmatprep.subr.mxu0 0.0
    %1054 = vmatpush1.msra.mxu0 0.0
    %1055 = vmatprep.subr.mxu0 0.0
    %1056 = vmatpush1.msra.mxu0 0.0
    %1057 = vmatprep.subr.mxu0 0.0
    %1058 = vmatpush1.msra.mxu0 0.0
    %1059 = vmatprep.subr.mxu0 0.0
    %1060 = vmatpush1.msra.mxu0 0.0
    %1061 = vmatprep.subr.mxu0 0.0
    %1062 = vmatpush1.msra.mxu0 0.0
    %1063 = vmatprep.subr.mxu0 0.0
    %1064 = vmatpush1.msra.mxu0 0.0
    %1065 = vmatprep.subr.mxu0 0.0
    %1066 = vmatpush1.msra.mxu0 0.0
    %1067 = vmatprep.subr.mxu0 0.0
    %1068 = vmatpush1.msra.mxu0 0.0
    %1069 = vmatprep.subr.mxu0 0.0
    %1070 = vmatpush1.msra.mxu0 0.0
    %1071 = vmatprep.subr.mxu0 0.0
    %1072 = vmatpush1.msra.mxu0 0.0
    %1073 = vmatprep.subr.mxu0 0.0
    %1074 = vmatpush1.msra.mxu0 0.0
    %1075 = vmatprep.subr.mxu0 0.0
    %1076 = vmatpush1.msra.mxu0 0.0
    %1077 = vmatprep.subr.mxu0 0.0
    %1078 = vmatpush1.msra.mxu0 0.0
    %1079 = vmatprep.subr.mxu0 0.0
    %1080 = vmatpush1.msra.mxu0 0.0
    %1081 = vmatprep.subr.mxu0 0.0
    %1082 = vmatpush1.msra.mxu0 0.0
    %1083 = vmatprep.subr.mxu0 0.0
    %1084 = vmatpush1.msra.mxu0 0.0
    %1085 = vmatprep.subr.mxu0 0.0
    %1086 = vmatpush1.msra.mxu0 0.0
    %1087 = vmatprep.subr.mxu0 0.0
    %1088 = vmatpush1.msra.mxu0 0.0
    %1089 = vmatprep.subr.mxu0 0.0
    %1090 = vmatpush1.msra.mxu0 0.0
    %1091 = vmatprep.subr.mxu0 0.0
    %1092 = vmatpush1.msra.mxu0 0.0
    %1093 = vmatprep.subr.mxu0 0.0
    %1094 = vmatpush1.msra.mxu0 0.0
    %1095 = vmatprep.subr.mxu0 0.0
    %1096 = vmatpush1.msra.mxu0 0.0
    %1097 = vmatprep.mubr.f32.mxu0 0.0
    %1098 = vmatmul.mubr.f32.gmra.mrb[0].mxu0 %v1031
    %v1099 = vpop.f32.mrb[0].mxu0
    %v1100 = vadd.f32 0.0, %v1099
    %v1101 = vpop.f32.mrb[0].mxu0
    %1102 = vdwg.mxu0
    %v1103 = vadd.f32 %v485, %v1100
    %v1104 = vtanh.pop %v1103
    %1106 = vrot.lane.b32.xlu0 %v1104, 32
    %v1107 = vpop.permute.xlu0 %1106
    %1109 = vst.msk [vmem:[%s3 + $0x8] sm:$0xff] %vm793, %v1107
    %v1110 = vsel %vm637, %v1104, 0
    %1112 = vmatprep.subr.mxu0 0.0
    %1113 = vmatpush1.msra.mxu0 %v29
    %1114 = vmatprep.subr.mxu0 0.0
    %1115 = vmatpush1.msra.mxu0 %v30
    %1116 = vmatprep.subr.mxu0 0.0
    %1117 = vmatpush1.msra.mxu0 %v31
    %1118 = vmatprep.subr.mxu0 0.0
    %1119 = vmatpush1.msra.mxu0 %v32
    %1120 = vmatprep.subr.mxu0 0.0
    %1121 = vmatpush1.msra.mxu0 0.0
    %1122 = vmatprep.subr.mxu0 0.0
    %1123 = vmatpush1.msra.mxu0 0.0
    %1124 = vmatprep.subr.mxu0 0.0
    %1125 = vmatpush1.msra.mxu0 0.0
    %1126 = vmatprep.subr.mxu0 0.0
    %1127 = vmatpush1.msra.mxu0 0.0
    %1128 = vmatprep.subr.mxu0 0.0
    %1129 = vmatpush1.msra.mxu0 0.0
    %1130 = vmatprep.subr.mxu0 0.0
    %1131 = vmatpush1.msra.mxu0 0.0
    %1132 = vmatprep.subr.mxu0 0.0
    %1133 = vmatpush1.msra.mxu0 0.0
    %1134 = vmatprep.subr.mxu0 0.0
    %1135 = vmatpush1.msra.mxu0 0.0
    %1136 = vmatprep.subr.mxu0 0.0
    %1137 = vmatpush1.msra.mxu0 0.0
    %1138 = vmatprep.subr.mxu0 0.0
    %1139 = vmatpush1.msra.mxu0 0.0
    %1140 = vmatprep.subr.mxu0 0.0
    %1141 = vmatpush1.msra.mxu0 0.0
    %1142 = vmatprep.subr.mxu0 0.0
    %1143 = vmatpush1.msra.mxu0 0.0
    %1144 = vmatprep.subr.mxu0 0.0
    %1145 = vmatpush1.msra.mxu0 0.0
    %1146 = vmatprep.subr.mxu0 0.0
    %1147 = vmatpush1.msra.mxu0 0.0
    %1148 = vmatprep.subr.mxu0 0.0
    %1149 = vmatpush1.msra.mxu0 0.0
    %1150 = vmatprep.subr.mxu0 0.0
    %1151 = vmatpush1.msra.mxu0 0.0
    %1152 = vmatprep.subr.mxu0 0.0
    %1153 = vmatpush1.msra.mxu0 0.0
    %1154 = vmatprep.subr.mxu0 0.0
    %1155 = vmatpush1.msra.mxu0 0.0
    %1156 = vmatprep.subr.mxu0 0.0
    %1157 = vmatpush1.msra.mxu0 0.0
    %1158 = vmatprep.subr.mxu0 0.0
    %1159 = vmatpush1.msra.mxu0 0.0
    %1160 = vmatprep.subr.mxu0 0.0
    %1161 = vmatpush1.msra.mxu0 0.0
    %1162 = vmatprep.subr.mxu0 0.0
    %1163 = vmatpush1.msra.mxu0 0.0
    %1164 = vmatprep.subr.mxu0 0.0
    %1165 = vmatpush1.msra.mxu0 0.0
    %1166 = vmatprep.subr.mxu0 0.0
    %1167 = vmatpush1.msra.mxu0 0.0
    %1168 = vmatprep.subr.mxu0 0.0
    %1169 = vmatpush1.msra.mxu0 0.0
    %1170 = vmatprep.subr.mxu0 0.0
    %1171 = vmatpush1.msra.mxu0 0.0
    %1172 = vmatprep.subr.mxu0 0.0
    %1173 = vmatpush1.msra.mxu0 0.0
    %1174 = vmatprep.subr.mxu0 0.0
    %1175 = vmatpush1.msra.mxu0 0.0
    %1176 = vmatprep.mubr.f32.mxu0 0.0
    %1177 = vmatmul.mubr.f32.gmra.mrb[0].mxu0 %v1110
    %v1178 = vpop.f32.mrb[0].mxu0
    %v1179 = vadd.f32 0.0, %v1178
    %v1180 = vpop.f32.mrb[0].mxu0
    %1181 = vdwg.mxu0
    %v1182 = vadd.f32 %v559, %v1179
    %v1183 = vtanh.pop %v1182
    %1185 = vrot.lane.b32.xlu0 %v1183, 64
    %v1186 = vpop.permute.xlu0 %1185
    %1188 = vst.msk [vmem:[%s3 + $0x8] sm:$0xff] %vm873, %v1186
    %v1189 = vsel %vm637, %v1183, 0
    %1191 = vmatprep.subr.mxu0 0.0
    %1192 = vmatpush1.msra.mxu0 %v29
    %1193 = vmatprep.subr.mxu0 0.0
    %1194 = vmatpush1.msra.mxu0 %v30
    %1195 = vmatprep.subr.mxu0 0.0
    %1196 = vmatpush1.msra.mxu0 %v31
    %1197 = vmatprep.subr.mxu0 0.0
    %1198 = vmatpush1.msra.mxu0 %v32
    %1199 = vmatprep.subr.mxu0 0.0
    %1200 = vmatpush1.msra.mxu0 0.0
    %1201 = vmatprep.subr.mxu0 0.0
    %1202 = vmatpush1.msra.mxu0 0.0
    %1203 = vmatprep.subr.mxu0 0.0
    %1204 = vmatpush1.msra.mxu0 0.0
    %1205 = vmatprep.subr.mxu0 0.0
    %1206 = vmatpush1.msra.mxu0 0.0
    %1207 = vmatprep.subr.mxu0 0.0
    %1208 = vmatpush1.msra.mxu0 0.0
    %1209 = vmatprep.subr.mxu0 0.0
    %1210 = vmatpush1.msra.mxu0 0.0
    %1211 = vmatprep.subr.mxu0 0.0
    %1212 = vmatpush1.msra.mxu0 0.0
    %1213 = vmatprep.subr.mxu0 0.0
    %1214 = vmatpush1.msra.mxu0 0.0
    %1215 = vmatprep.subr.mxu0 0.0
    %1216 = vmatpush1.msra.mxu0 0.0
    %1217 = vmatprep.subr.mxu0 0.0
    %1218 = vmatpush1.msra.mxu0 0.0
    %1219 = vmatprep.subr.mxu0 0.0
    %1220 = vmatpush1.msra.mxu0 0.0
    %1221 = vmatprep.subr.mxu0 0.0
    %1222 = vmatpush1.msra.mxu0 0.0
    %1223 = vmatprep.subr.mxu0 0.0
    %1224 = vmatpush1.msra.mxu0 0.0
    %1225 = vmatprep.subr.mxu0 0.0
    %1226 = vmatpush1.msra.mxu0 0.0
    %1227 = vmatprep.subr.mxu0 0.0
    %1228 = vmatpush1.msra.mxu0 0.0
    %1229 = vmatprep.subr.mxu0 0.0
    %1230 = vmatpush1.msra.mxu0 0.0
    %1231 = vmatprep.subr.mxu0 0.0
    %1232 = vmatpush1.msra.mxu0 0.0
    %1233 = vmatprep.subr.mxu0 0.0
    %1234 = vmatpush1.msra.mxu0 0.0
    %1235 = vmatprep.subr.mxu0 0.0
    %1236 = vmatpush1.msra.mxu0 0.0
    %1237 = vmatprep.subr.mxu0 0.0
    %1238 = vmatpush1.msra.mxu0 0.0
    %1239 = vmatprep.subr.mxu0 0.0
    %1240 = vmatpush1.msra.mxu0 0.0
    %1241 = vmatprep.subr.mxu0 0.0
    %1242 = vmatpush1.msra.mxu0 0.0
    %1243 = vmatprep.subr.mxu0 0.0
    %1244 = vmatpush1.msra.mxu0 0.0
    %1245 = vmatprep.subr.mxu0 0.0
    %1246 = vmatpush1.msra.mxu0 0.0
    %1247 = vmatprep.subr.mxu0 0.0
    %1248 = vmatpush1.msra.mxu0 0.0
    %1249 = vmatprep.subr.mxu0 0.0
    %1250 = vmatpush1.msra.mxu0 0.0
    %1251 = vmatprep.subr.mxu0 0.0
    %1252 = vmatpush1.msra.mxu0 0.0
    %1253 = vmatprep.subr.mxu0 0.0
    %1254 = vmatpush1.msra.mxu0 0.0
    %1255 = vmatprep.mubr.f32.mxu0 0.0
    %1256 = vmatmul.mubr.f32.gmra.mrb[0].mxu0 %v1189
    %v1257 = vpop.f32.mrb[0].mxu0
    %v1258 = vadd.f32 0.0, %v1257
    %v1259 = vpop.f32.mrb[0].mxu0
    %1260 = vdwg.mxu0
    %v1261 = vadd.f32 %v633, %v1258
    %v1262 = vtanh.pop %v1261
    %1264 = vrot.lane.b32.xlu0 %v1262, 96
    %v1265 = vpop.permute.xlu0 %1264
    %1267 = vst.msk [vmem:[%s3 + $0x8] sm:$0xff] %vm953, %v1265
    %v1268 = vlaneseq
    %v1269 = vshrl.u32 %v1268, 7
    %v1270 = vsub.s32 0, %v1269
    %v1271 = vrot.slane %v38, %v1270
    %v1272 = vsel %vm637, %v1262, 0
    %1274 = vmatprep.subr.mxu0 0.0
    %1275 = vmatpush1.msra.mxu0 %v34
    %1276 = vmatprep.subr.mxu0 0.0
    %1277 = vmatpush1.msra.mxu0 %v35
    %1278 = vmatprep.subr.mxu0 0.0
    %1279 = vmatpush1.msra.mxu0 %v36
    %1280 = vmatprep.subr.mxu0 0.0
    %1281 = vmatpush1.msra.mxu0 %v37
    %1282 = vmatprep.subr.mxu0 0.0
    %1283 = vmatpush1.msra.mxu0 0.0
    %1284 = vmatprep.subr.mxu0 0.0
    %1285 = vmatpush1.msra.mxu0 0.0
    %1286 = vmatprep.subr.mxu0 0.0
    %1287 = vmatpush1.msra.mxu0 0.0
    %1288 = vmatprep.subr.mxu0 0.0
    %1289 = vmatpush1.msra.mxu0 0.0
    %1290 = vmatprep.subr.mxu0 0.0
    %1291 = vmatpush1.msra.mxu0 0.0
    %1292 = vmatprep.subr.mxu0 0.0
    %1293 = vmatpush1.msra.mxu0 0.0
    %1294 = vmatprep.subr.mxu0 0.0
    %1295 = vmatpush1.msra.mxu0 0.0
    %1296 = vmatprep.subr.mxu0 0.0
    %1297 = vmatpush1.msra.mxu0 0.0
    %1298 = vmatprep.subr.mxu0 0.0
    %1299 = vmatpush1.msra.mxu0 0.0
    %1300 = vmatprep.subr.mxu0 0.0
    %1301 = vmatpush1.msra.mxu0 0.0
    %1302 = vmatprep.subr.mxu0 0.0
    %1303 = vmatpush1.msra.mxu0 0.0
    %1304 = vmatprep.subr.mxu0 0.0
    %1305 = vmatpush1.msra.mxu0 0.0
    %1306 = vmatprep.subr.mxu0 0.0
    %1307 = vmatpush1.msra.mxu0 0.0
    %1308 = vmatprep.subr.mxu0 0.0
    %1309 = vmatpush1.msra.mxu0 0.0
    %1310 = vmatprep.subr.mxu0 0.0
    %1311 = vmatpush1.msra.mxu0 0.0
    %1312 = vmatprep.subr.mxu0 0.0
    %1313 = vmatpush1.msra.mxu0 0.0
    %1314 = vmatprep.subr.mxu0 0.0
    %1315 = vmatpush1.msra.mxu0 0.0
    %1316 = vmatprep.subr.mxu0 0.0
    %1317 = vmatpush1.msra.mxu0 0.0
    %1318 = vmatprep.subr.mxu0 0.0
    %1319 = vmatpush1.msra.mxu0 0.0
    %1320 = vmatprep.subr.mxu0 0.0
    %1321 = vmatpush1.msra.mxu0 0.0
    %1322 = vmatprep.subr.mxu0 0.0
    %1323 = vmatpush1.msra.mxu0 0.0
    %1324 = vmatprep.subr.mxu0 0.0
    %1325 = vmatpush1.msra.mxu0 0.0
    %1326 = vmatprep.subr.mxu0 0.0
    %1327 = vmatpush1.msra.mxu0 0.0
    %1328 = vmatprep.subr.mxu0 0.0
    %1329 = vmatpush1.msra.mxu0 0.0
    %1330 = vmatprep.subr.mxu0 0.0
    %1331 = vmatpush1.msra.mxu0 0.0
    %1332 = vmatprep.subr.mxu0 0.0
    %1333 = vmatpush1.msra.mxu0 0.0
    %1334 = vmatprep.subr.mxu0 0.0
    %1335 = vmatpush1.msra.mxu0 0.0
    %1336 = vmatprep.subr.mxu0 0.0
    %1337 = vmatpush1.msra.mxu0 0.0
    %1338 = vmatprep.mubr.f32.mxu0 0.0
    %1339 = vmatmul.mubr.f32.gmra.mrb[0].mxu0 %v1272
    %v1340 = vpop.f32.mrb[0].mxu0
    %v1341 = vadd.f32 %v1271, %v1340
    %v1342 = vpop.f32.mrb[0].mxu0
    %1343 = vdwg.mxu0
    %1344 = vst.msk [vmem:[%s3 + $0x10] sm:$0xff] %vm637, %v1341
    // Predicated region
    $region18: #{rnn_net_forward.1} parent=1 // pred_check
      _
    $region19: #{rnn_net_forward.1} parent=1 // pred_check_branch
      %1346 = sbr.rel (0) target = $region21
    $region20: #{rnn_net_forward.1} parent=1 // pred_region
      _
    $region21: #{rnn_net_forward.1} parent=1 // pred_fallthru
      _
    // Predicated region
    $region22: #{rnn_net_forward.1} parent=1 // pred_check
      _
    $region23: #{rnn_net_forward.1} parent=1 // pred_check_branch
      %1348 = sbr.rel (0) target = $region25
    $region24: #{rnn_net_forward.1} parent=1 // pred_region
      _
    $region25: #{rnn_net_forward.1} parent=1 // pred_fallthru
      _
    %1349 = vsyncpa [#allocation3], 1

</llo_original>
